<compile_context>
chip_gen: v5e
topology: v5e:2x2
jax: 0.10.0
libtpu: 0.0.40
codegen_flags: <defaults>
</compile_context>

<pallas_src>
import functools

import jax
import jax.numpy as jnp
from jax.experimental import pallas as pl
from jax.experimental.pallas import tpu as pltpu


# ---------------------------------------------------------------------------
# helpers
# ---------------------------------------------------------------------------
def _round_up(x, m):
    return ((x + m - 1) // m) * m


def _choose_tiles(m_rows, lpad, c, o_pad, budget=20 * 2**20):
    """Pick (ot, ck) = (C_out tile, C_in tile) fitting an approximate VMEM budget.

    Budget accounts for double-buffered input/weight/output blocks plus the f32
    accumulator scratch.  384 deliberately excluded from ot (256-wide MXU fill).
    """
    ot_cands = [t for t in (512, 256, 128) if t <= o_pad and o_pad % t == 0]
    if not ot_cands:
        ot_cands = [o_pad]
    if c % 128 == 0:
        ck_cands, seen = [], set()
        for k in (c, 1024, 512, 256, 128):
            if k <= c and c % k == 0 and k not in seen:
                seen.add(k)
                ck_cands.append(k)
    else:
        ck_cands = [c]  # can't tile a non-128-multiple lane dim

    def need(ot, ck):
        return (2 * m_rows * ot * 4        # double-buffered f32 output block
                + m_rows * ot * 4          # f32 accumulator scratch
                + 2 * 9 * ck * ot * 2      # double-buffered bf16 weight block
                + 2 * lpad * ck * 2        # double-buffered bf16 activation block
                + 2 * ot * 4)              # bias

    best = None
    for ot in ot_cands:
        for ck in ck_cands:
            n = need(ot, ck)
            if n <= budget:
                return ot, ck, n
            if best is None or n < best[2]:
                best = (ot, ck, n)
    return best


# ---------------------------------------------------------------------------
# Pallas kernel: 9 flat-shifted MXU matmuls + K-accumulate + bias + ReLU
# ---------------------------------------------------------------------------
def _conv3x3_bn_relu_kernel(x_ref, w_ref, b_ref, o_ref, acc_ref, *, wp, m):
    # x_ref:   (1, Lpad, ck)  bf16 flattened, spatially padded NHWC activations
    # w_ref:   (9, ck, ot)    bf16 BN-scale-folded weights (tap-major)
    # b_ref:   (1, ot)        f32 folded BN bias
    # o_ref:   (1, M, ot)     output tile, M = H*(W+2) rows (2 garbage cols/row)
    # acc_ref: (M, ot)        f32 accumulator scratch (lives across K steps)
    k = pl.program_id(2)

    def tap(kh, kw):
        off = kh * wp + kw                      # static flat offset
        win = x_ref[0, off:off + m, :]          # (M, ck) contiguous, no relayout
        return jnp.dot(win, w_ref[3 * kh + kw],
                       preferred_element_type=jnp.float32)

    part = tap(0, 0)                            # init from first tap (no zeros pass)
    for t in range(1, 9):
        part = part + tap(t // 3, t % 3)

    @pl.when(k == 0)
    def _():
        acc_ref[...] = part

    @pl.when(k > 0)
    def _():
        acc_ref[...] += part

    @pl.when(k == pl.num_programs(2) - 1)
    def _():
        y = acc_ref[...] + b_ref[...]
        o_ref[0] = jnp.maximum(y, 0.0).astype(o_ref.dtype)


# ---------------------------------------------------------------------------
# wrapper: NCHW module-facing API, BN folding, flattening, pallas_call
# ---------------------------------------------------------------------------
def conv_bn_relu(x, weight, gamma, beta, running_mean, running_var, eps=1e-5,
                 out_dtype=jnp.float32):
    """x: (N, C, H, W) f32, weight: (O, C, 3, 3) f32. Returns (N, O, H, W)."""
    N, C, H, W = x.shape
    O, Cw, KH, KW = weight.shape
    assert Cw == C and KH == 3 and KW == 3

    Hp, Wp = H + 2, W + 2
    M = H * Wp                       # matmul rows per plane (incl. 2 garbage cols/row)
    L = Hp * Wp
    Lpad = _round_up(L + 2, 8)       # +2 keeps the (kh=2,kw=2) flat slice in-bounds

    # ---- fold BatchNorm (inference, running stats): scale into W, keep bias ----
    scale = gamma / jnp.sqrt(running_var + eps)                      # (O,)
    bias = beta - running_mean * scale                               # (O,)

    # ---- activations: NCHW -> NHWC once, pad=1, flatten rows, cast bf16 ----
    x_nhwc = jnp.transpose(x, (0, 2, 3, 1))                          # (N, H, W, C)
    xp = jnp.pad(x_nhwc, ((0, 0), (1, 1), (1, 1), (0, 0))).astype(jnp.bfloat16)
    xf = xp.reshape(N, L, C)
    xf = jnp.pad(xf, ((0, 0), (0, Lpad - L), (0, 0)))                # (N, Lpad, C)

    # ---- weights: fold scale, reorder to (9, C, O), pad O to 128-multiple ----
    O_pad = _round_up(O, 128)
    w = weight * scale[:, None, None, None]                          # (O, C, 3, 3)
    w = jnp.transpose(w, (2, 3, 1, 0)).reshape(9, C, O)              # (kh*3+kw, C, O)
    w = jnp.pad(w, ((0, 0), (0, 0), (0, O_pad - O))).astype(jnp.bfloat16)
    b = jnp.pad(bias, (0, O_pad - O)).reshape(1, O_pad).astype(jnp.float32)

    ot, ck, vmem_need = _choose_tiles(M, Lpad, C, O_pad)
    nk = C // ck
    grid = (O_pad // ot, N, nk)      # weight block constant along batch axis;
                                     # K innermost -> standard accumulator pattern

    cp_kwargs = dict(dimension_semantics=("parallel", "parallel", "arbitrary"))
    if vmem_need > 12 * 2**20:
        # raise the scoped-VMEM limit only when the working set needs it
        cp_kwargs["vmem_limit_bytes"] = min(int(vmem_need * 1.4) + (2 << 20), 96 << 20)

    kernel = functools.partial(_conv3x3_bn_relu_kernel, wp=Wp, m=M)

    out = pl.pallas_call(
        kernel,
        out_shape=jax.ShapeDtypeStruct((N, M, O_pad), out_dtype),
        grid_spec=pltpu.PrefetchScalarGridSpec(
            num_scalar_prefetch=0,
            grid=grid,
            in_specs=[
                pl.BlockSpec((1, Lpad, ck), lambda j, n, k: (n, 0, k)),
                pl.BlockSpec((9, ck, ot), lambda j, n, k: (0, k, j)),
                pl.BlockSpec((1, ot), lambda j, n, k: (0, j)),
            ],
            out_specs=pl.BlockSpec((1, M, ot), lambda j, n, k: (n, 0, j)),
            scratch_shapes=[pltpu.VMEM((M, ot), jnp.float32)],
        ),
        compiler_params=pltpu.CompilerParams(**cp_kwargs),
        cost_estimate=pl.CostEstimate(
            flops=2 * N * M * 9 * C * O_pad,
            transcendentals=0,
            bytes_accessed=int(xf.size * 2 + w.size * 2
                               + N * M * O_pad * jnp.dtype(out_dtype).itemsize),
        ),
    )(xf, w, b)

    # rows m = i*Wp + j; drop the 2 garbage columns (j >= W) and padded output
    # channels — fused into the NHWC->NCHW transpose required by the module.
    out = out.reshape(N, H, Wp, O_pad)[:, :, :W, :O]
    return jnp.transpose(out, (0, 3, 1, 2))


# ---------------------------------------------------------------------------
# Pure-JAX reference (eval-mode Conv -> BN -> ReLU)
# ---------------------------------------------------------------------------
def _reference(x, weight, gamma, beta, mean, var, eps=1e-5):
    y = jax.lax.conv_general_dilated(
        x, weight, window_strides=(1, 1), padding=((1, 1), (1, 1)),
        dimension_numbers=("NCHW", "OIHW", "NCHW"),
        precision=jax.lax.Precision.HIGHEST)
    scale = gamma / jnp.sqrt(var + eps)
    bias = beta - mean * scale
    y = y * scale[None, :, None, None] + bias[None, :, None, None]
    return jnp.maximum(y, 0.0)


if __name__ == "__main__":
    key = jax.random.PRNGKey(0)
    k_x, k_w, k_g, k_b = jax.random.split(key, 4)

    N, C_in, C_out, H, W = 2, 4, 8, 16, 16

    x = jax.random.normal(k_x, (N, C_in, H, W), dtype=jnp.float32)
    weight = jax.random.normal(k_w, (C_out, C_in, 3, 3), dtype=jnp.float32) * 0.1
    gamma = 1.0 + 0.1 * jax.random.normal(k_g, (C_out,), dtype=jnp.float32)
    beta = 0.1 * jax.random.normal(k_b, (C_out,), dtype=jnp.float32)
    # BatchNorm running stats (eval-mode semantics); default init mean=0, var=1
    running_mean = jnp.zeros((C_out,), dtype=jnp.float32)
    running_var = jnp.ones((C_out,), dtype=jnp.float32)

    fn = jax.jit(conv_bn_relu)
    out = jax.block_until_ready(
        fn(x, weight, gamma, beta, running_mean, running_var))

    ref = _reference(x, weight, gamma, beta, running_mean, running_var)
    assert out.shape == (N, C_out, H, W)
    # bf16 matmul operands (f32 accumulation) -> slightly loosened tolerance
    max_err = float(jnp.max(jnp.abs(out - ref)))
    assert jnp.allclose(out, ref, atol=5e-2, rtol=5e-2), (
        "mismatch vs reference, max abs err = %g" % max_err)

    print("KERNEL_OK")
</pallas_src>

<mosaic_0001>
module attributes {stable_mosaic.version = 11 : i64} {
  func.func @_conv3x3_bn_relu_kernel(%arg0: i32, %arg1: i32, %arg2: i32, %arg3: memref<1x328x4xbf16, #tpu.memory_space<vmem>>, %arg4: memref<9x4x128xbf16, #tpu.memory_space<vmem>>, %arg5: memref<1x128xf32, #tpu.memory_space<vmem>>, %arg6: memref<1x288x128xf32, #tpu.memory_space<vmem>>, %arg7: memref<288x128xf32, #tpu.memory_space<vmem>>) attributes {dimension_semantics = [#tpu.dimension_semantics<parallel>, #tpu.dimension_semantics<parallel>, #tpu.dimension_semantics<arbitrary>], iteration_bounds = array<i64: 1, 2, 1>, scalar_prefetch = 0 : i64, scratch_operands = 1 : i64, tpu.core_type = #tpu.core_type<tc>, window_params = [{transform_indices = @transform_0, window_bounds = array<i64: 1, 328, 4>}, {transform_indices = @transform_1, window_bounds = array<i64: 9, 4, 128>}, {transform_indices = @transform_2, window_bounds = array<i64: 1, 128>}, {transform_indices = @transform_3, window_bounds = array<i64: 1, 288, 128>}]} {
    %c0 = arith.constant 0 : index
    %c0_0 = arith.constant 0 : index
    %c0_1 = arith.constant 0 : index
    %0 = vector.load %arg3[%c0, %c0_0, %c0_1] : memref<1x328x4xbf16, #tpu.memory_space<vmem>>, vector<1x288x4xbf16>
    %1 = vector.shape_cast %0 : vector<1x288x4xbf16> to vector<288x4xbf16>
    %c0_2 = arith.constant 0 : index
    %c0_3 = arith.constant 0 : index
    %c0_4 = arith.constant 0 : index
    %2 = vector.load %arg4[%c0_2, %c0_3, %c0_4] : memref<9x4x128xbf16, #tpu.memory_space<vmem>>, vector<1x4x128xbf16>
    %3 = vector.shape_cast %2 : vector<1x4x128xbf16> to vector<4x128xbf16>
    %cst = arith.constant dense<0.000000e+00> : vector<288x128xf32>
    %4 = tpu.matmul %1, %3, %cst {dimension_numbers = #tpu.dot_dimension_numbers<[1], [0], [0], [1], [0, 0, 1, 1], [], []>} : vector<288x4xbf16>, vector<4x128xbf16>, vector<288x128xf32> -> vector<288x128xf32>
    %c0_5 = arith.constant 0 : index
    %c1 = arith.constant 1 : index
    %c0_6 = arith.constant 0 : index
    %5 = vector.load %arg3[%c0_5, %c1, %c0_6] : memref<1x328x4xbf16, #tpu.memory_space<vmem>>, vector<1x288x4xbf16>
    %6 = vector.shape_cast %5 : vector<1x288x4xbf16> to vector<288x4xbf16>
    %c1_7 = arith.constant 1 : index
    %c0_8 = arith.constant 0 : index
    %c0_9 = arith.constant 0 : index
    %7 = vector.load %arg4[%c1_7, %c0_8, %c0_9] : memref<9x4x128xbf16, #tpu.memory_space<vmem>>, vector<1x4x128xbf16>
    %8 = vector.shape_cast %7 : vector<1x4x128xbf16> to vector<4x128xbf16>
    %cst_10 = arith.constant dense<0.000000e+00> : vector<288x128xf32>
    %9 = tpu.matmul %6, %8, %cst_10 {dimension_numbers = #tpu.dot_dimension_numbers<[1], [0], [0], [1], [0, 0, 1, 1], [], []>} : vector<288x4xbf16>, vector<4x128xbf16>, vector<288x128xf32> -> vector<288x128xf32>
    %10 = arith.addf %4, %9 : vector<288x128xf32>
    %c0_11 = arith.constant 0 : index
    %c2 = arith.constant 2 : index
    %c0_12 = arith.constant 0 : index
    %11 = vector.load %arg3[%c0_11, %c2, %c0_12] : memref<1x328x4xbf16, #tpu.memory_space<vmem>>, vector<1x288x4xbf16>
    %12 = vector.shape_cast %11 : vector<1x288x4xbf16> to vector<288x4xbf16>
    %c2_13 = arith.constant 2 : index
    %c0_14 = arith.constant 0 : index
    %c0_15 = arith.constant 0 : index
    %13 = vector.load %arg4[%c2_13, %c0_14, %c0_15] : memref<9x4x128xbf16, #tpu.memory_space<vmem>>, vector<1x4x128xbf16>
    %14 = vector.shape_cast %13 : vector<1x4x128xbf16> to vector<4x128xbf16>
    %cst_16 = arith.constant dense<0.000000e+00> : vector<288x128xf32>
    %15 = tpu.matmul %12, %14, %cst_16 {dimension_numbers = #tpu.dot_dimension_numbers<[1], [0], [0], [1], [0, 0, 1, 1], [], []>} : vector<288x4xbf16>, vector<4x128xbf16>, vector<288x128xf32> -> vector<288x128xf32>
    %16 = arith.addf %10, %15 : vector<288x128xf32>
    %c0_17 = arith.constant 0 : index
    %c18 = arith.constant 18 : index
    %c0_18 = arith.constant 0 : index
    %17 = vector.load %arg3[%c0_17, %c18, %c0_18] : memref<1x328x4xbf16, #tpu.memory_space<vmem>>, vector<1x288x4xbf16>
    %18 = vector.shape_cast %17 : vector<1x288x4xbf16> to vector<288x4xbf16>
    %c3 = arith.constant 3 : index
    %c0_19 = arith.constant 0 : index
    %c0_20 = arith.constant 0 : index
    %19 = vector.load %arg4[%c3, %c0_19, %c0_20] : memref<9x4x128xbf16, #tpu.memory_space<vmem>>, vector<1x4x128xbf16>
    %20 = vector.shape_cast %19 : vector<1x4x128xbf16> to vector<4x128xbf16>
    %cst_21 = arith.constant dense<0.000000e+00> : vector<288x128xf32>
    %21 = tpu.matmul %18, %20, %cst_21 {dimension_numbers = #tpu.dot_dimension_numbers<[1], [0], [0], [1], [0, 0, 1, 1], [], []>} : vector<288x4xbf16>, vector<4x128xbf16>, vector<288x128xf32> -> vector<288x128xf32>
    %22 = arith.addf %16, %21 : vector<288x128xf32>
    %c0_22 = arith.constant 0 : index
    %c19 = arith.constant 19 : index
    %c0_23 = arith.constant 0 : index
    %23 = vector.load %arg3[%c0_22, %c19, %c0_23] : memref<1x328x4xbf16, #tpu.memory_space<vmem>>, vector<1x288x4xbf16>
    %24 = vector.shape_cast %23 : vector<1x288x4xbf16> to vector<288x4xbf16>
    %c4 = arith.constant 4 : index
    %c0_24 = arith.constant 0 : index
    %c0_25 = arith.constant 0 : index
    %25 = vector.load %arg4[%c4, %c0_24, %c0_25] : memref<9x4x128xbf16, #tpu.memory_space<vmem>>, vector<1x4x128xbf16>
    %26 = vector.shape_cast %25 : vector<1x4x128xbf16> to vector<4x128xbf16>
    %cst_26 = arith.constant dense<0.000000e+00> : vector<288x128xf32>
    %27 = tpu.matmul %24, %26, %cst_26 {dimension_numbers = #tpu.dot_dimension_numbers<[1], [0], [0], [1], [0, 0, 1, 1], [], []>} : vector<288x4xbf16>, vector<4x128xbf16>, vector<288x128xf32> -> vector<288x128xf32>
    %28 = arith.addf %22, %27 : vector<288x128xf32>
    %c0_27 = arith.constant 0 : index
    %c20 = arith.constant 20 : index
    %c0_28 = arith.constant 0 : index
    %29 = vector.load %arg3[%c0_27, %c20, %c0_28] : memref<1x328x4xbf16, #tpu.memory_space<vmem>>, vector<1x288x4xbf16>
    %30 = vector.shape_cast %29 : vector<1x288x4xbf16> to vector<288x4xbf16>
    %c5 = arith.constant 5 : index
    %c0_29 = arith.constant 0 : index
    %c0_30 = arith.constant 0 : index
    %31 = vector.load %arg4[%c5, %c0_29, %c0_30] : memref<9x4x128xbf16, #tpu.memory_space<vmem>>, vector<1x4x128xbf16>
    %32 = vector.shape_cast %31 : vector<1x4x128xbf16> to vector<4x128xbf16>
    %cst_31 = arith.constant dense<0.000000e+00> : vector<288x128xf32>
    %33 = tpu.matmul %30, %32, %cst_31 {dimension_numbers = #tpu.dot_dimension_numbers<[1], [0], [0], [1], [0, 0, 1, 1], [], []>} : vector<288x4xbf16>, vector<4x128xbf16>, vector<288x128xf32> -> vector<288x128xf32>
    %34 = arith.addf %28, %33 : vector<288x128xf32>
    %c0_32 = arith.constant 0 : index
    %c36 = arith.constant 36 : index
    %c0_33 = arith.constant 0 : index
    %35 = vector.load %arg3[%c0_32, %c36, %c0_33] : memref<1x328x4xbf16, #tpu.memory_space<vmem>>, vector<1x288x4xbf16>
    %36 = vector.shape_cast %35 : vector<1x288x4xbf16> to vector<288x4xbf16>
    %c6 = arith.constant 6 : index
    %c0_34 = arith.constant 0 : index
    %c0_35 = arith.constant 0 : index
    %37 = vector.load %arg4[%c6, %c0_34, %c0_35] : memref<9x4x128xbf16, #tpu.memory_space<vmem>>, vector<1x4x128xbf16>
    %38 = vector.shape_cast %37 : vector<1x4x128xbf16> to vector<4x128xbf16>
    %cst_36 = arith.constant dense<0.000000e+00> : vector<288x128xf32>
    %39 = tpu.matmul %36, %38, %cst_36 {dimension_numbers = #tpu.dot_dimension_numbers<[1], [0], [0], [1], [0, 0, 1, 1], [], []>} : vector<288x4xbf16>, vector<4x128xbf16>, vector<288x128xf32> -> vector<288x128xf32>
    %40 = arith.addf %34, %39 : vector<288x128xf32>
    %c0_37 = arith.constant 0 : index
    %c37 = arith.constant 37 : index
    %c0_38 = arith.constant 0 : index
    %41 = vector.load %arg3[%c0_37, %c37, %c0_38] : memref<1x328x4xbf16, #tpu.memory_space<vmem>>, vector<1x288x4xbf16>
    %42 = vector.shape_cast %41 : vector<1x288x4xbf16> to vector<288x4xbf16>
    %c7 = arith.constant 7 : index
    %c0_39 = arith.constant 0 : index
    %c0_40 = arith.constant 0 : index
    %43 = vector.load %arg4[%c7, %c0_39, %c0_40] : memref<9x4x128xbf16, #tpu.memory_space<vmem>>, vector<1x4x128xbf16>
    %44 = vector.shape_cast %43 : vector<1x4x128xbf16> to vector<4x128xbf16>
    %cst_41 = arith.constant dense<0.000000e+00> : vector<288x128xf32>
    %45 = tpu.matmul %42, %44, %cst_41 {dimension_numbers = #tpu.dot_dimension_numbers<[1], [0], [0], [1], [0, 0, 1, 1], [], []>} : vector<288x4xbf16>, vector<4x128xbf16>, vector<288x128xf32> -> vector<288x128xf32>
    %46 = arith.addf %40, %45 : vector<288x128xf32>
    %c0_42 = arith.constant 0 : index
    %c38 = arith.constant 38 : index
    %c0_43 = arith.constant 0 : index
    %47 = vector.load %arg3[%c0_42, %c38, %c0_43] : memref<1x328x4xbf16, #tpu.memory_space<vmem>>, vector<1x288x4xbf16>
    %48 = vector.shape_cast %47 : vector<1x288x4xbf16> to vector<288x4xbf16>
    %c8 = arith.constant 8 : index
    %c0_44 = arith.constant 0 : index
    %c0_45 = arith.constant 0 : index
    %49 = vector.load %arg4[%c8, %c0_44, %c0_45] : memref<9x4x128xbf16, #tpu.memory_space<vmem>>, vector<1x4x128xbf16>
    %50 = vector.shape_cast %49 : vector<1x4x128xbf16> to vector<4x128xbf16>
    %cst_46 = arith.constant dense<0.000000e+00> : vector<288x128xf32>
    %51 = tpu.matmul %48, %50, %cst_46 {dimension_numbers = #tpu.dot_dimension_numbers<[1], [0], [0], [1], [0, 0, 1, 1], [], []>} : vector<288x4xbf16>, vector<4x128xbf16>, vector<288x128xf32> -> vector<288x128xf32>
    %52 = arith.addf %46, %51 : vector<288x128xf32>
    %c0_i32 = arith.constant 0 : i32
    %53 = arith.cmpi eq, %arg2, %c0_i32 : i32
    %54 = arith.extui %53 : i1 to i32
    %c0_i32_47 = arith.constant 0 : i32
    %55 = arith.cmpi ne, %54, %c0_i32_47 : i32
    scf.if %55 {
      %c0_52 = arith.constant 0 : index
      %c0_53 = arith.constant 0 : index
      %62 = vector.load %arg7[%c0_52, %c0_53] : memref<288x128xf32, #tpu.memory_space<vmem>>, vector<288x128xf32>
      tpu.vector_store %arg7[%c0_52, %c0_53], %52 {strides = array<i32>} : memref<288x128xf32, #tpu.memory_space<vmem>>, vector<288x128xf32>,
    } else {
    }
    %c0_i32_48 = arith.constant 0 : i32
    %56 = arith.cmpi sgt, %arg2, %c0_i32_48 : i32
    %57 = arith.extui %56 : i1 to i32
    %c0_i32_49 = arith.constant 0 : i32
    %58 = arith.cmpi ne, %57, %c0_i32_49 : i32
    scf.if %58 {
      %c0_52 = arith.constant 0 : index
      %c0_53 = arith.constant 0 : index
      %62 = vector.load %arg7[%c0_52, %c0_53] : memref<288x128xf32, #tpu.memory_space<vmem>>, vector<288x128xf32>
      %63 = arith.addf %62, %52 : vector<288x128xf32>
      %c0_54 = arith.constant 0 : index
      %c0_55 = arith.constant 0 : index
      %64 = vector.load %arg7[%c0_54, %c0_55] : memref<288x128xf32, #tpu.memory_space<vmem>>, vector<288x128xf32>
      tpu.vector_store %arg7[%c0_54, %c0_55], %63 {strides = array<i32>} : memref<288x128xf32, #tpu.memory_space<vmem>>, vector<288x128xf32>,
    } else {
    }
    %c0_i32_50 = arith.constant 0 : i32
    %59 = arith.cmpi eq, %arg2, %c0_i32_50 : i32
    %60 = arith.extui %59 : i1 to i32
    %c0_i32_51 = arith.constant 0 : i32
    %61 = arith.cmpi ne, %60, %c0_i32_51 : i32
    scf.if %61 {
      %c0_52 = arith.constant 0 : index
      %c0_53 = arith.constant 0 : index
      %62 = vector.load %arg7[%c0_52, %c0_53] : memref<288x128xf32, #tpu.memory_space<vmem>>, vector<288x128xf32>
      %c0_54 = arith.constant 0 : index
      %c0_55 = arith.constant 0 : index
      %63 = vector.load %arg5[%c0_54, %c0_55] : memref<1x128xf32, #tpu.memory_space<vmem>>, vector<1x128xf32>
      %64 = vector.broadcast %63 : vector<1x128xf32> to vector<288x128xf32>
      %65 = arith.addf %62, %64 : vector<288x128xf32>
      %cst_56 = arith.constant 0.000000e+00 : f32
      %66 = vector.broadcast %cst_56 : f32 to vector<288x128xf32>
      %67 = arith.maximumf %65, %66 : vector<288x128xf32>
      %c0_57 = arith.constant 0 : index
      %c0_58 = arith.constant 0 : index
      %c0_59 = arith.constant 0 : index
      %68 = vector.load %arg6[%c0_57, %c0_58, %c0_59] : memref<1x288x128xf32, #tpu.memory_space<vmem>>, vector<1x288x128xf32>
      %69 = vector.shape_cast %68 : vector<1x288x128xf32> to vector<288x128xf32>
      %70 = vector.shape_cast %67 : vector<288x128xf32> to vector<1x288x128xf32>
      tpu.vector_store %arg6[%c0_57, %c0_58, %c0_59], %70 {strides = array<i32>} : memref<1x288x128xf32, #tpu.memory_space<vmem>>, vector<1x288x128xf32>,
    } else {
    }
    return
  }
  func.func @transform_0(%arg0: i32, %arg1: i32, %arg2: i32) -> (i32, i32, i32) {
    %c0_i32 = arith.constant 0 : i32
    %c0_i32_0 = arith.constant 0 : i32
    return %arg1, %c0_i32, %arg2 : i32, i32, i32
  }
  func.func @transform_1(%arg0: i32, %arg1: i32, %arg2: i32) -> (i32, i32, i32) {
    %c0_i32 = arith.constant 0 : i32
    %c0_i32_0 = arith.constant 0 : i32
    return %c0_i32, %arg2, %arg0 : i32, i32, i32
  }
  func.func @transform_2(%arg0: i32, %arg1: i32, %arg2: i32) -> (i32, i32) {
    %c0_i32 = arith.constant 0 : i32
    %c0_i32_0 = arith.constant 0 : i32
    return %c0_i32, %arg0 : i32, i32
  }
  func.func @transform_3(%arg0: i32, %arg1: i32, %arg2: i32) -> (i32, i32, i32) {
    %c0_i32 = arith.constant 0 : i32
    %c0_i32_0 = arith.constant 0 : i32
    return %arg1, %c0_i32, %arg0 : i32, i32, i32
  }
}

</mosaic_0001>

<llo_original>
// kernel: conv_bn_relu.1
$region0: #{conv_bn_relu.1}
  #allocation0 [shape = 'u32[]', space=smem, size = 0x4, offset = 0x4, fixed_abs, tag = 'smem constant byte address 0x4 - core index']
  #allocation1 [shape = 'u32[72,128]{1,0:T(1,128)}', space=vmem, size = 0x9000, scoped, tag = 'internal scratch']
  #allocation2 [shape = 'f32[288,128]{1,0:T(8,128)}', space=vmem, size = 0x24000, scoped, tag = 'scratch operand']
  %s0 = inlined_call_operand.vmem [shape: bf16[2,328,4], index: 0, kind: input, shape index: {}]
  %s1 = inlined_call_operand.vmem [shape: bf16[9,4,128], index: 1, kind: input, shape index: {}]
  %s2 = inlined_call_operand.vmem [shape: f32[1,128], index: 2, kind: input, shape index: {}]
  %s3 = inlined_call_operand.vmem [shape: f32[2,288,128], index: 3, kind: output, shape index: {}]
  %s4 = sld [smem:[#allocation0]]
  $region57: #{conv_bn_relu.1} parent=0
    _
  %s6 = ssub.s32 1, %s4
  %s7 = scalar_select 0, %s6, %s4
  loop: start=0, step=1, limit=4
  $region2: #{conv_bn_relu.1} parent=0 // loop_pre_header
    _
  $region3: #{conv_bn_relu.1} parent=0 // loop_header
    %s9 = sphi 0, %s13
    %p10 = scmp.ge.s32.totalorder %s9, 4
    %s16 = sphi 0, %s35
    %s17 = sphi 0, %s31
    %s18 = sphi 0, %s27
    %s19 = sphi 0, %s16
    %s20 = sphi 0, %s17
    %s21 = sphi 0, %s18
    %s22 = sphi 0, %s19
    %s23 = sphi 0, %s20
    %s24 = sphi 0, %s21
    %s40 = sphi 0, %s42
    %s43 = sphi 0, %s40
    %s44 = sphi 0, %s43
    %s60 = sphi 0, %s44
    %s68 = sphi 0, %s70
    %s71 = sphi 0, %s68
    %s72 = sphi 0, %s71
    %s88 = sphi 0, %s72
    %s94 = sphi 0, %s96
    %s97 = sphi 0, %s94
    %s98 = sphi 0, %s97
    %s114 = sphi 0, %s98
    %s122 = sphi 0, %s124
    %s125 = sphi 0, %s122
    %s126 = sphi 0, %s125
    %s142 = sphi 0, %s126
  $region4: #{conv_bn_relu.1} parent=0 // loop_header_branch
    %12 = sbr.rel (%p10) target = $region8
  $region5: #{conv_bn_relu.1} parent=0 // loop_body
    %s14 = ssub.s32 %s9, 1
    %s15 = ssub.s32 %s9, 2
    %s25 = sadd.s32 1, %s18
    %p26 = scmp.ge.s32.totalorder %s25, 1
    %s27 = scalar_select %p26, 0, %s25
    %s28 = sadd.s32 1, %s17
    %s29 = scalar_select %p26, %s28, %s17
    %p30 = scmp.ge.s32.totalorder %s29, 2
    %s31 = scalar_select %p30, 0, %s29
    %s32 = sadd.s32 1, %s16
    %s33 = scalar_select %p30, %s32, %s16
    %p34 = scmp.ge.s32.totalorder %s33, 1
    %s35 = scalar_select %p34, 0, %s33
    %s36 = ssub.s32 %s17, %s31
    %s37 = ssub.s32 %s18, %s27
    %s38 = sor.u32 %s36, %s37
    %p39 = scmp.eq.s32.totalorder %s38, 0
    %s41 = sadd.s32 %s40, 1
    %s42 = scalar_select %p39, %s40, %s41
    %p45 = pneg %p39
    %p46 = scmp.eq.s32.totalorder %s9, 1
    %p47 = por %p45, %p46
    %p48 = scmp.ne.s32.totalorder %s40, %s43
    %p49 = scmp.eq.s32.totalorder %s9, 0
    %p50 = por %p48, %p49
    %p51 = scmp.ne.s32.totalorder %s40, %s43
    %p52 = scmp.eq.s32.totalorder %s14, 1
    %p53 = por %p51, %p52
    %p54 = scmp.ne.s32.totalorder %s43, %s44
    %p55 = scmp.eq.s32.totalorder %s14, 0
    %p56 = por %p54, %p55
    %p57 = scmp.ne.s32.totalorder %s43, %s44
    %p58 = scmp.eq.s32.totalorder %s15, 1
    %p59 = por %p57, %p58
    %p61 = scmp.ne.s32.totalorder %s44, %s60
    %p62 = scmp.eq.s32.totalorder %s15, 0
    %p63 = por %p61, %p62
    %s64 = ssub.s32 %s18, %s27
    %s65 = ssub.s32 %s16, %s35
    %s66 = sor.u32 %s64, %s65
    %p67 = scmp.eq.s32.totalorder %s66, 0
    %s69 = sadd.s32 %s68, 1
    %s70 = scalar_select %p67, %s68, %s69
    %p73 = pneg %p67
    %p74 = scmp.eq.s32.totalorder %s9, 1
    %p75 = por %p73, %p74
    %p76 = scmp.ne.s32.totalorder %s68, %s71
    %p77 = scmp.eq.s32.totalorder %s9, 0
    %p78 = por %p76, %p77
    %p79 = scmp.ne.s32.totalorder %s68, %s71
    %p80 = scmp.eq.s32.totalorder %s14, 1
    %p81 = por %p79, %p80
    %p82 = scmp.ne.s32.totalorder %s71, %s72
    %p83 = scmp.eq.s32.totalorder %s14, 0
    %p84 = por %p82, %p83
    %p85 = scmp.ne.s32.totalorder %s71, %s72
    %p86 = scmp.eq.s32.totalorder %s15, 1
    %p87 = por %p85, %p86
    %p89 = scmp.ne.s32.totalorder %s72, %s88
    %p90 = scmp.eq.s32.totalorder %s15, 0
    %p91 = por %p89, %p90
    %s92 = ssub.s32 %s16, %s35
    %p93 = scmp.eq.s32.totalorder %s92, 0
    %s95 = sadd.s32 %s94, 1
    %s96 = scalar_select %p93, %s94, %s95
    %p99 = pneg %p93
    %p100 = scmp.eq.s32.totalorder %s9, 1
    %p101 = por %p99, %p100
    %p102 = scmp.ne.s32.totalorder %s94, %s97
    %p103 = scmp.eq.s32.totalorder %s9, 0
    %p104 = por %p102, %p103
    %p105 = scmp.ne.s32.totalorder %s94, %s97
    %p106 = scmp.eq.s32.totalorder %s14, 1
    %p107 = por %p105, %p106
    %p108 = scmp.ne.s32.totalorder %s97, %s98
    %p109 = scmp.eq.s32.totalorder %s14, 0
    %p110 = por %p108, %p109
    %p111 = scmp.ne.s32.totalorder %s97, %s98
    %p112 = scmp.eq.s32.totalorder %s15, 1
    %p113 = por %p111, %p112
    %p115 = scmp.ne.s32.totalorder %s98, %s114
    %p116 = scmp.eq.s32.totalorder %s15, 0
    %p117 = por %p115, %p116
    %s118 = ssub.s32 %s17, %s31
    %s119 = ssub.s32 %s16, %s35
    %s120 = sor.u32 %s118, %s119
    %p121 = scmp.eq.s32.totalorder %s120, 0
    %s123 = sadd.s32 %s122, 1
    %s124 = scalar_select %p121, %s122, %s123
    %p127 = pneg %p121
    %p128 = scmp.eq.s32.totalorder %s9, 1
    %p129 = por %p127, %p128
    %p130 = scmp.ne.s32.totalorder %s122, %s125
    %p131 = scmp.eq.s32.totalorder %s9, 0
    %p132 = por %p130, %p131
    %p133 = scmp.ne.s32.totalorder %s122, %s125
    %p134 = scmp.eq.s32.totalorder %s14, 1
    %p135 = por %p133, %p134
    %p136 = scmp.ne.s32.totalorder %s125, %s126
    %p137 = scmp.eq.s32.totalorder %s14, 0
    %p138 = por %p136, %p137
    %p139 = scmp.ne.s32.totalorder %s125, %s126
    %p140 = scmp.eq.s32.totalorder %s15, 1
    %p141 = por %p139, %p140
    %p143 = scmp.ne.s32.totalorder %s126, %s142
    %p144 = scmp.eq.s32.totalorder %s15, 0
    %p145 = por %p143, %p144
    %p146 = scmp.le.s32.totalorder 1, %s9
    %p147 = scmp.lt.s32.totalorder %s9, 3
    %p148 = pnand %p146, %p147
    %p149 = pneg %p148
    // Predicated region
    $region9: #{conv_bn_relu.1} parent=5 // pred_check
      _
    $region10: #{conv_bn_relu.1} parent=5 // pred_check_branch
      %151 = sbr.rel (%p148) target = $region12
    $region11: #{conv_bn_relu.1} parent=5 // pred_region
      %s152 = ssub.s32 %s9, 1
      // Predicated region
      $region13: #{conv_bn_relu.1} parent=11 // pred_check
        %p153 = pneg %p84
      $region14: #{conv_bn_relu.1} parent=11 // pred_check_branch
        %155 = sbr.rel (%p153) target = $region16
      $region15: #{conv_bn_relu.1} parent=11 // pred_region
        %p156 = scmp.lt.s32.totalorder %s21, 0
        %s157 = scalar_select %p156, %s21, 0
        %p158 = scmp.lt.s32.totalorder %s19, 0
        %s159 = scalar_select %p158, %s19, 0
        %s160 = sadd.s32 %s159, %s157
        %s161 = smul.addr %s160, 2
        %s162 = scalar_lea.vmem %s1, %s161
      $region16: #{conv_bn_relu.1} parent=11 // pred_fallthru
        _
      // Predicated region
      $region17: #{conv_bn_relu.1} parent=11 // pred_check
        %p163 = pneg %p110
      $region18: #{conv_bn_relu.1} parent=11 // pred_check_branch
        %165 = sbr.rel (%p163) target = $region20
      $region19: #{conv_bn_relu.1} parent=11 // pred_region
        %p166 = scmp.lt.s32.totalorder %s19, 0
        %s167 = scalar_select %p166, %s19, 0
        %s168 = scalar_lea.vmem %s2, %s167
      $region20: #{conv_bn_relu.1} parent=11 // pred_fallthru
        _
    $region12: #{conv_bn_relu.1} parent=5 // pred_fallthru
      _
    %p169 = scmp.lt.s32.totalorder %s9, 2
    // Predicated region
    $region21: #{conv_bn_relu.1} parent=5 // pred_check
      %p170 = pneg %p169
    $region22: #{conv_bn_relu.1} parent=5 // pred_check_branch
      %172 = sbr.rel (%p170) target = $region24
    $region23: #{conv_bn_relu.1} parent=5 // pred_region
      // Predicated region
      $region25: #{conv_bn_relu.1} parent=23 // pred_check
        %p173 = pneg %p50
      $region26: #{conv_bn_relu.1} parent=23 // pred_check_branch
        %175 = sbr.rel (%p173) target = $region28
      $region27: #{conv_bn_relu.1} parent=23 // pred_region
        %p176 = scmp.lt.s32.totalorder %s17, 1
        %s177 = scalar_select %p176, %s17, 1
        %p178 = scmp.lt.s32.totalorder %s18, 0
        %s179 = scalar_select %p178, %s18, 0
        %s180 = smul.addr %s177, 41
        %s181 = sadd.s32 %s179, %s180
        %s182 = smul.addr %s181, 4
        %s183 = scalar_lea.vmem %s0, %s182
      $region28: #{conv_bn_relu.1} parent=23 // pred_fallthru
        _
    $region24: #{conv_bn_relu.1} parent=5 // pred_fallthru
      _
    %p184 = scmp.le.s32.totalorder 1, %s9
    %p185 = scmp.lt.s32.totalorder %s9, 3
    %p186 = pnand %p184, %p185
    %p187 = pneg %p186
    // Predicated region
    $region29: #{conv_bn_relu.1} parent=5 // pred_check
      _
    $region30: #{conv_bn_relu.1} parent=5 // pred_check_branch
      %189 = sbr.rel (%p186) target = $region32
    $region31: #{conv_bn_relu.1} parent=5 // pred_region
      %s190 = ssub.s32 %s9, 1
      %p191 = scmp.lt.s32.totalorder %s20, 1
      %s192 = scalar_select %p191, %s20, 1
      %p193 = scmp.lt.s32.totalorder %s21, 0
      %s194 = scalar_select %p193, %s21, 0
      %s195 = smul.addr %s192, 41
      %s196 = sadd.s32 %s194, %s195
      %s197 = smul.addr %s196, 4
      %s198 = scalar_lea.vmem %s0, %s197
      %p199 = pneg %p56
      %p200 = pneg %p53
      %p201 = scmp.lt.s32.totalorder %s21, 0
      %s202 = scalar_select %p201, %s21, 0
      %p203 = scmp.lt.s32.totalorder %s19, 0
      %s204 = scalar_select %p203, %s19, 0
      %s205 = sadd.s32 %s204, %s202
      %s206 = smul.addr %s205, 2
      %s207 = scalar_lea.vmem %s1, %s206
      %p208 = pneg %p84
      %p209 = pneg %p81
      %p210 = scmp.lt.s32.totalorder %s19, 0
      %s211 = scalar_select %p210, %s19, 0
      %s212 = scalar_lea.vmem %s2, %s211
      %p213 = pneg %p110
      %p214 = pneg %p107
      %p215 = pneg %p138
      %p216 = pneg %p135
      %p217 = scmp.lt.s32.totalorder %s20, 1
      %s218 = scalar_select %p217, %s20, 1
      %p219 = scmp.lt.s32.totalorder %s19, 0
      %s220 = scalar_select %p219, %s19, 0
      %s221 = smul.addr %s218, 36
      %s222 = sadd.s32 %s220, %s221
      %s223 = smul.addr %s222, 8
      %s224 = scalar_lea.vmem %s3, %s223
      %p225 = scmp.lt.s32.totalorder %s20, 1
      %s226 = scalar_select %p225, %s20, 1
      %p227 = scmp.lt.s32.totalorder %s21, 0
      %s228 = scalar_select %p227, %s21, 0
      %s229 = smul.addr %s226, 41
      %s230 = sadd.s32 %s228, %s229
      %s231 = smul.addr %s230, 4
      %s232 = scalar_lea.vmem %s0, %s231
      %p233 = scmp.lt.s32.totalorder %s21, 0
      %s234 = scalar_select %p233, %s21, 0
      %p235 = scmp.lt.s32.totalorder %s19, 0
      %s236 = scalar_select %p235, %s19, 0
      %s237 = sadd.s32 %s236, %s234
      %s238 = smul.addr %s237, 2
      %s239 = scalar_lea.vmem %s1, %s238
      %p240 = scmp.lt.s32.totalorder %s19, 0
      %s241 = scalar_select %p240, %s19, 0
      %s242 = scalar_lea.vmem %s2, %s241
      %p243 = scmp.lt.s32.totalorder %s20, 1
      %s244 = scalar_select %p243, %s20, 1
      %p245 = scmp.lt.s32.totalorder %s19, 0
      %s246 = scalar_select %p245, %s19, 0
      %s247 = smul.addr %s244, 36
      %s248 = sadd.s32 %s246, %s247
      %s249 = smul.addr %s248, 8
      %s250 = scalar_lea.vmem %s3, %s249
      %v252 = vld [vmem:[%s232] sm:$0xf]
      %v253 = vld [vmem:[%s232 + $0x4] sm:$0xf]
      %v254 = vld [vmem:[%s232 + $0x8] sm:$0xf]
      %v255 = vld [vmem:[%s232 + $0xc] sm:$0xf]
      %v256 = vld [vmem:[%s232 + $0x10] sm:$0xf]
      %v257 = vld [vmem:[%s232 + $0x14] sm:$0xf]
      %v258 = vld [vmem:[%s232 + $0x18] sm:$0xf]
      %v259 = vld [vmem:[%s232 + $0x1c] sm:$0xf]
      %v260 = vld [vmem:[%s232 + $0x20] sm:$0xf]
      %v261 = vld [vmem:[%s232 + $0x24] sm:$0xf]
      %v262 = vld [vmem:[%s232 + $0x28] sm:$0xf]
      %v263 = vld [vmem:[%s232 + $0x2c] sm:$0xf]
      %v264 = vld [vmem:[%s232 + $0x30] sm:$0xf]
      %v265 = vld [vmem:[%s232 + $0x34] sm:$0xf]
      %v266 = vld [vmem:[%s232 + $0x38] sm:$0xf]
      %v267 = vld [vmem:[%s232 + $0x3c] sm:$0xf]
      %v268 = vld [vmem:[%s232 + $0x40] sm:$0xf]
      %v269 = vld [vmem:[%s232 + $0x44] sm:$0xf]
      %v270 = vld [vmem:[%s232 + $0x48] sm:$0xf]
      %v271 = vld [vmem:[%s232 + $0x4c] sm:$0xf]
      %v272 = vld [vmem:[%s232 + $0x50] sm:$0xf]
      %v273 = vld [vmem:[%s232 + $0x54] sm:$0xf]
      %v274 = vld [vmem:[%s232 + $0x58] sm:$0xf]
      %v275 = vld [vmem:[%s232 + $0x5c] sm:$0xf]
      %v276 = vld [vmem:[%s232 + $0x60] sm:$0xf]
      %v277 = vld [vmem:[%s232 + $0x64] sm:$0xf]
      %v278 = vld [vmem:[%s232 + $0x68] sm:$0xf]
      %v279 = vld [vmem:[%s232 + $0x6c] sm:$0xf]
      %v280 = vld [vmem:[%s232 + $0x70] sm:$0xf]
      %v281 = vld [vmem:[%s232 + $0x74] sm:$0xf]
      %v282 = vld [vmem:[%s232 + $0x78] sm:$0xf]
      %v283 = vld [vmem:[%s232 + $0x7c] sm:$0xf]
      %v284 = vld [vmem:[%s232 + $0x80] sm:$0xf]
      %v285 = vld [vmem:[%s232 + $0x84] sm:$0xf]
      %v286 = vld [vmem:[%s232 + $0x88] sm:$0xf]
      %v287 = vld [vmem:[%s232 + $0x8c] sm:$0xf]
      %v288 = vld [vmem:[%s239] sm:$0x3]
      %v289 = vld [vmem:[%s232 + $0x90] sm:$0x1]
      %s290 = scalar_lea.vmem %s239, 2
      %v291 = vld [vmem:[%s290] sm:$0x3]
      %v329 = vunpack.c.l.b16 %v252
      %v330 = vunpack.c.l.b16 %v253
      %v331 = vunpack.c.l.b16 %v254
      %v332 = vunpack.c.l.b16 %v255
      %v333 = vunpack.c.l.b16 %v256
      %v334 = vunpack.c.l.b16 %v257
      %v335 = vunpack.c.l.b16 %v258
      %v336 = vunpack.c.l.b16 %v259
      %v337 = vunpack.c.l.b16 %v260
      %v338 = vunpack.c.l.b16 %v261
      %v339 = vunpack.c.l.b16 %v262
      %v340 = vunpack.c.l.b16 %v263
      %v341 = vunpack.c.l.b16 %v264
      %v342 = vunpack.c.l.b16 %v265
      %v343 = vunpack.c.l.b16 %v266
      %v344 = vunpack.c.l.b16 %v267
      %v345 = vunpack.c.l.b16 %v268
      %v346 = vunpack.c.l.b16 %v269
      %v347 = vunpack.c.l.b16 %v270
      %v348 = vunpack.c.l.b16 %v271
      %v349 = vunpack.c.l.b16 %v272
      %v350 = vunpack.c.l.b16 %v273
      %v351 = vunpack.c.l.b16 %v274
      %v352 = vunpack.c.l.b16 %v275
      %v353 = vunpack.c.l.b16 %v276
      %v354 = vunpack.c.l.b16 %v277
      %v355 = vunpack.c.l.b16 %v278
      %v356 = vunpack.c.l.b16 %v279
      %v357 = vunpack.c.l.b16 %v280
      %v358 = vunpack.c.l.b16 %v281
      %v359 = vunpack.c.l.b16 %v282
      %v360 = vunpack.c.l.b16 %v283
      %v361 = vunpack.c.l.b16 %v284
      %v362 = vunpack.c.l.b16 %v285
      %v363 = vunpack.c.l.b16 %v286
      %v364 = vunpack.c.l.b16 %v287
      %v365 = vunpack.c.l.b16 %v289
      %v366 = vpack.c.b16 %v330, %v329
      %v367 = vpack.c.b16 %v332, %v331
      %v368 = vpack.c.b16 %v334, %v333
      %v369 = vpack.c.b16 %v336, %v335
      %v370 = vpack.c.b16 %v338, %v337
      %v371 = vpack.c.b16 %v340, %v339
      %v372 = vpack.c.b16 %v342, %v341
      %v373 = vpack.c.b16 %v344, %v343
      %v374 = vpack.c.b16 %v346, %v345
      %v375 = vpack.c.b16 %v348, %v347
      %v376 = vpack.c.b16 %v350, %v349
      %v377 = vpack.c.b16 %v352, %v351
      %v378 = vpack.c.b16 %v354, %v353
      %v379 = vpack.c.b16 %v356, %v355
      %v380 = vpack.c.b16 %v358, %v357
      %v381 = vpack.c.b16 %v360, %v359
      %v382 = vpack.c.b16 %v362, %v361
      %v383 = vpack.c.b16 %v364, %v363
      %v384 = vpack.c.b16 %v365, %v365
      %vm385 = vsmask.f32 7424
      %v387 = vshrl.u32 %v366, 16
      %v389 = vshll.u32 %v366, 16
      %v391 = vrot.slane %v389, 1
      %v392 = vor.u32 %v387, %v391
      %v394 = vshll.u32 %v367, 16
      %v396 = vrot.slane %v394, 1
      %v397 = vsel %vm385, %v392, %v396
      %v398 = vshrl.u32 %v367, 16
      %v400 = vor.u32 %v398, %v396
      %v402 = vshll.u32 %v368, 16
      %v404 = vrot.slane %v402, 1
      %v405 = vsel %vm385, %v400, %v404
      %v406 = vshrl.u32 %v368, 16
      %v408 = vor.u32 %v406, %v404
      %v410 = vshll.u32 %v369, 16
      %v412 = vrot.slane %v410, 1
      %v413 = vsel %vm385, %v408, %v412
      %v414 = vshrl.u32 %v369, 16
      %v416 = vor.u32 %v414, %v412
      %v418 = vshll.u32 %v370, 16
      %v420 = vrot.slane %v418, 1
      %v421 = vsel %vm385, %v416, %v420
      %v422 = vshrl.u32 %v370, 16
      %v424 = vor.u32 %v422, %v420
      %v426 = vshll.u32 %v371, 16
      %v428 = vrot.slane %v426, 1
      %v429 = vsel %vm385, %v424, %v428
      %v430 = vshrl.u32 %v371, 16
      %v432 = vor.u32 %v430, %v428
      %v434 = vshll.u32 %v372, 16
      %v436 = vrot.slane %v434, 1
      %v437 = vsel %vm385, %v432, %v436
      %v438 = vshrl.u32 %v372, 16
      %v440 = vor.u32 %v438, %v436
      %v442 = vshll.u32 %v373, 16
      %v444 = vrot.slane %v442, 1
      %v445 = vsel %vm385, %v440, %v444
      %v446 = vshrl.u32 %v373, 16
      %v448 = vor.u32 %v446, %v444
      %v450 = vshll.u32 %v374, 16
      %v452 = vrot.slane %v450, 1
      %v453 = vsel %vm385, %v448, %v452
      %v454 = vshrl.u32 %v374, 16
      %v456 = vor.u32 %v454, %v452
      %v458 = vshll.u32 %v375, 16
      %v460 = vrot.slane %v458, 1
      %v461 = vsel %vm385, %v456, %v460
      %v462 = vshrl.u32 %v375, 16
      %v464 = vor.u32 %v462, %v460
      %v466 = vshll.u32 %v376, 16
      %v468 = vrot.slane %v466, 1
      %v469 = vsel %vm385, %v464, %v468
      %v470 = vshrl.u32 %v376, 16
      %v472 = vor.u32 %v470, %v468
      %v474 = vshll.u32 %v377, 16
      %v476 = vrot.slane %v474, 1
      %v477 = vsel %vm385, %v472, %v476
      %v478 = vshrl.u32 %v377, 16
      %v480 = vor.u32 %v478, %v476
      %v482 = vshll.u32 %v378, 16
      %v484 = vrot.slane %v482, 1
      %v485 = vsel %vm385, %v480, %v484
      %v486 = vshrl.u32 %v378, 16
      %v488 = vor.u32 %v486, %v484
      %v490 = vshll.u32 %v379, 16
      %v492 = vrot.slane %v490, 1
      %v493 = vsel %vm385, %v488, %v492
      %v494 = vshrl.u32 %v379, 16
      %v496 = vor.u32 %v494, %v492
      %v498 = vshll.u32 %v380, 16
      %v500 = vrot.slane %v498, 1
      %v501 = vsel %vm385, %v496, %v500
      %v502 = vshrl.u32 %v380, 16
      %v504 = vor.u32 %v502, %v500
      %v506 = vshll.u32 %v381, 16
      %v508 = vrot.slane %v506, 1
      %v509 = vsel %vm385, %v504, %v508
      %v510 = vshrl.u32 %v381, 16
      %v512 = vor.u32 %v510, %v508
      %v514 = vshll.u32 %v382, 16
      %v516 = vrot.slane %v514, 1
      %v517 = vsel %vm385, %v512, %v516
      %v518 = vshrl.u32 %v382, 16
      %v520 = vor.u32 %v518, %v516
      %v522 = vshll.u32 %v383, 16
      %v524 = vrot.slane %v522, 1
      %v525 = vsel %vm385, %v520, %v524
      %v526 = vshrl.u32 %v383, 16
      %v528 = vor.u32 %v526, %v524
      %v530 = vshll.u32 %v384, 16
      %v532 = vrot.slane %v530, 1
      %v533 = vsel %vm385, %v528, %v532
      %vm534 = vcmask 31744
      %v536 = vsel %vm534, %v397, 0
      %v539 = vsel %vm534, %v405, 0
      %v542 = vsel %vm534, %v413, 0
      %v545 = vsel %vm534, %v421, 0
      %v548 = vsel %vm534, %v429, 0
      %v551 = vsel %vm534, %v437, 0
      %v554 = vsel %vm534, %v445, 0
      %v557 = vsel %vm534, %v453, 0
      %v560 = vsel %vm534, %v461, 0
      %v563 = vsel %vm534, %v469, 0
      %v566 = vsel %vm534, %v477, 0
      %v569 = vsel %vm534, %v485, 0
      %v572 = vsel %vm534, %v493, 0
      %v575 = vsel %vm534, %v501, 0
      %v578 = vsel %vm534, %v509, 0
      %v581 = vsel %vm534, %v517, 0
      %v584 = vsel %vm534, %v525, 0
      %v587 = vsel %vm534, %v533, 0
      %vm589 = vcmask 1041408
      %v591 = vsel %vm589, %v291, 0
      %593 = vmatpush.bf16.msra.mxu0 0
      %594 = vmatpush.bf16.msra.mxu0 0
      %595 = vmatpush.bf16.msra.mxu0 0
      %596 = vmatpush.bf16.msra.mxu0 0
      %597 = vmatpush.bf16.msra.mxu0 0
      %598 = vmatpush.bf16.msra.mxu0 0
      %599 = vmatpush.bf16.msra.mxu0 0
      %600 = vmatpush.bf16.msra.mxu0 %v591
      %601 = vmatmul.bf16.gmra.mxu0 %v536
      %v602 = vpop.f32.mrf.mxu0
      %v603 = vadd.f32 0.0, %v602
      %v604 = vpop.f32.mrf.mxu0
      %v605 = vadd.f32 0.0, %v604
      %606 = vmatmul.bf16.gmra.mxu0 %v539
      %v607 = vpop.f32.mrf.mxu0
      %v608 = vadd.f32 0.0, %v607
      %v609 = vpop.f32.mrf.mxu0
      %v610 = vadd.f32 0.0, %v609
      %611 = vmatmul.bf16.gmra.mxu0 %v542
      %v612 = vpop.f32.mrf.mxu0
      %v613 = vadd.f32 0.0, %v612
      %v614 = vpop.f32.mrf.mxu0
      %v615 = vadd.f32 0.0, %v614
      %616 = vmatmul.bf16.gmra.mxu0 %v545
      %v617 = vpop.f32.mrf.mxu0
      %v618 = vadd.f32 0.0, %v617
      %v619 = vpop.f32.mrf.mxu0
      %v620 = vadd.f32 0.0, %v619
      %621 = vmatmul.bf16.gmra.mxu0 %v548
      %v622 = vpop.f32.mrf.mxu0
      %v623 = vadd.f32 0.0, %v622
      %v624 = vpop.f32.mrf.mxu0
      %v625 = vadd.f32 0.0, %v624
      %626 = vmatmul.bf16.gmra.mxu0 %v551
      %v627 = vpop.f32.mrf.mxu0
      %v628 = vadd.f32 0.0, %v627
      %v629 = vpop.f32.mrf.mxu0
      %v630 = vadd.f32 0.0, %v629
      %631 = vmatmul.bf16.gmra.mxu0 %v554
      %v632 = vpop.f32.mrf.mxu0
      %v633 = vadd.f32 0.0, %v632
      %v634 = vpop.f32.mrf.mxu0
      %v635 = vadd.f32 0.0, %v634
      %636 = vmatmul.bf16.gmra.mxu0 %v557
      %v637 = vpop.f32.mrf.mxu0
      %v638 = vadd.f32 0.0, %v637
      %v639 = vpop.f32.mrf.mxu0
      %v640 = vadd.f32 0.0, %v639
      %641 = vmatmul.bf16.gmra.mxu0 %v560
      %v642 = vpop.f32.mrf.mxu0
      %v643 = vadd.f32 0.0, %v642
      %v644 = vpop.f32.mrf.mxu0
      %v645 = vadd.f32 0.0, %v644
      %646 = vmatmul.bf16.gmra.mxu0 %v563
      %v647 = vpop.f32.mrf.mxu0
      %v648 = vadd.f32 0.0, %v647
      %v649 = vpop.f32.mrf.mxu0
      %v650 = vadd.f32 0.0, %v649
      %651 = vmatmul.bf16.gmra.mxu0 %v566
      %v652 = vpop.f32.mrf.mxu0
      %v653 = vadd.f32 0.0, %v652
      %v654 = vpop.f32.mrf.mxu0
      %v655 = vadd.f32 0.0, %v654
      %656 = vmatmul.bf16.gmra.mxu0 %v569
      %v657 = vpop.f32.mrf.mxu0
      %v658 = vadd.f32 0.0, %v657
      %v659 = vpop.f32.mrf.mxu0
      %v660 = vadd.f32 0.0, %v659
      %661 = vmatmul.bf16.gmra.mxu0 %v572
      %v662 = vpop.f32.mrf.mxu0
      %v663 = vadd.f32 0.0, %v662
      %v664 = vpop.f32.mrf.mxu0
      %v665 = vadd.f32 0.0, %v664
      %666 = vmatmul.bf16.gmra.mxu0 %v575
      %v667 = vpop.f32.mrf.mxu0
      %v668 = vadd.f32 0.0, %v667
      %v669 = vpop.f32.mrf.mxu0
      %v670 = vadd.f32 0.0, %v669
      %671 = vmatmul.bf16.gmra.mxu0 %v578
      %v672 = vpop.f32.mrf.mxu0
      %v673 = vadd.f32 0.0, %v672
      %v674 = vpop.f32.mrf.mxu0
      %v675 = vadd.f32 0.0, %v674
      %676 = vmatmul.bf16.gmra.mxu0 %v581
      %v677 = vpop.f32.mrf.mxu0
      %v678 = vadd.f32 0.0, %v677
      %v679 = vpop.f32.mrf.mxu0
      %v680 = vadd.f32 0.0, %v679
      %681 = vmatmul.bf16.gmra.mxu0 %v584
      %v682 = vpop.f32.mrf.mxu0
      %v683 = vadd.f32 0.0, %v682
      %v684 = vpop.f32.mrf.mxu0
      %v685 = vadd.f32 0.0, %v684
      %686 = vmatmul.bf16.gmra.mxu0 %v587
      %v687 = vpop.f32.mrf.mxu0
      %v688 = vadd.f32 0.0, %v687
      %v689 = vpop.f32.mrf.mxu0
      %v690 = vadd.f32 0.0, %v689
      %691 = vdwg.mxu0
      %v692 = vsel %vm534, %v366, 0
      %v694 = vsel %vm534, %v367, 0
      %v696 = vsel %vm534, %v368, 0
      %v698 = vsel %vm534, %v369, 0
      %v700 = vsel %vm534, %v370, 0
      %v702 = vsel %vm534, %v371, 0
      %v704 = vsel %vm534, %v372, 0
      %v706 = vsel %vm534, %v373, 0
      %v708 = vsel %vm534, %v374, 0
      %v710 = vsel %vm534, %v375, 0
      %v712 = vsel %vm534, %v376, 0
      %v714 = vsel %vm534, %v377, 0
      %v716 = vsel %vm534, %v378, 0
      %v718 = vsel %vm534, %v379, 0
      %v720 = vsel %vm534, %v380, 0
      %v722 = vsel %vm534, %v381, 0
      %v724 = vsel %vm534, %v382, 0
      %v726 = vsel %vm534, %v383, 0
      %v729 = vsel %vm589, %v288, 0
      %731 = vmatpush.bf16.msra.mxu0 0
      %732 = vmatpush.bf16.msra.mxu0 0
      %733 = vmatpush.bf16.msra.mxu0 0
      %734 = vmatpush.bf16.msra.mxu0 0
      %735 = vmatpush.bf16.msra.mxu0 0
      %736 = vmatpush.bf16.msra.mxu0 0
      %737 = vmatpush.bf16.msra.mxu0 0
      %738 = vmatpush.bf16.msra.mxu0 %v729
      %739 = vmatmul.bf16.gmra.mxu0 %v692
      %v740 = vpop.f32.mrf.mxu0
      %v741 = vadd.f32 %v603, %v740
      %v742 = vpop.f32.mrf.mxu0
      %v743 = vadd.f32 %v605, %v742
      %744 = vmatmul.bf16.gmra.mxu0 %v694
      %v745 = vpop.f32.mrf.mxu0
      %v746 = vadd.f32 %v608, %v745
      %v747 = vpop.f32.mrf.mxu0
      %v748 = vadd.f32 %v610, %v747
      %749 = vmatmul.bf16.gmra.mxu0 %v696
      %v750 = vpop.f32.mrf.mxu0
      %v751 = vadd.f32 %v613, %v750
      %v752 = vpop.f32.mrf.mxu0
      %v753 = vadd.f32 %v615, %v752
      %754 = vmatmul.bf16.gmra.mxu0 %v698
      %v755 = vpop.f32.mrf.mxu0
      %v756 = vadd.f32 %v618, %v755
      %v757 = vpop.f32.mrf.mxu0
      %v758 = vadd.f32 %v620, %v757
      %759 = vmatmul.bf16.gmra.mxu0 %v700
      %v760 = vpop.f32.mrf.mxu0
      %v761 = vadd.f32 %v623, %v760
      %v762 = vpop.f32.mrf.mxu0
      %v763 = vadd.f32 %v625, %v762
      %764 = vmatmul.bf16.gmra.mxu0 %v702
      %v765 = vpop.f32.mrf.mxu0
      %v766 = vadd.f32 %v628, %v765
      %v767 = vpop.f32.mrf.mxu0
      %v768 = vadd.f32 %v630, %v767
      %769 = vmatmul.bf16.gmra.mxu0 %v704
      %v770 = vpop.f32.mrf.mxu0
      %v771 = vadd.f32 %v633, %v770
      %v772 = vpop.f32.mrf.mxu0
      %v773 = vadd.f32 %v635, %v772
      %774 = vmatmul.bf16.gmra.mxu0 %v706
      %v775 = vpop.f32.mrf.mxu0
      %v776 = vadd.f32 %v638, %v775
      %v777 = vpop.f32.mrf.mxu0
      %v778 = vadd.f32 %v640, %v777
      %779 = vmatmul.bf16.gmra.mxu0 %v708
      %v780 = vpop.f32.mrf.mxu0
      %v781 = vadd.f32 %v643, %v780
      %v782 = vpop.f32.mrf.mxu0
      %v783 = vadd.f32 %v645, %v782
      %784 = vmatmul.bf16.gmra.mxu0 %v710
      %v785 = vpop.f32.mrf.mxu0
      %v786 = vadd.f32 %v648, %v785
      %v787 = vpop.f32.mrf.mxu0
      %v788 = vadd.f32 %v650, %v787
      %789 = vmatmul.bf16.gmra.mxu0 %v712
      %v790 = vpop.f32.mrf.mxu0
      %v791 = vadd.f32 %v653, %v790
      %v792 = vpop.f32.mrf.mxu0
      %v793 = vadd.f32 %v655, %v792
      %794 = vmatmul.bf16.gmra.mxu0 %v714
      %v795 = vpop.f32.mrf.mxu0
      %v796 = vadd.f32 %v658, %v795
      %v797 = vpop.f32.mrf.mxu0
      %v798 = vadd.f32 %v660, %v797
      %799 = vmatmul.bf16.gmra.mxu0 %v716
      %v800 = vpop.f32.mrf.mxu0
      %v801 = vadd.f32 %v663, %v800
      %v802 = vpop.f32.mrf.mxu0
      %v803 = vadd.f32 %v665, %v802
      %804 = vmatmul.bf16.gmra.mxu0 %v718
      %v805 = vpop.f32.mrf.mxu0
      %v806 = vadd.f32 %v668, %v805
      %v807 = vpop.f32.mrf.mxu0
      %v808 = vadd.f32 %v670, %v807
      %809 = vmatmul.bf16.gmra.mxu0 %v720
      %v810 = vpop.f32.mrf.mxu0
      %v811 = vadd.f32 %v673, %v810
      %v812 = vpop.f32.mrf.mxu0
      %v813 = vadd.f32 %v675, %v812
      %814 = vmatmul.bf16.gmra.mxu0 %v722
      %v815 = vpop.f32.mrf.mxu0
      %v816 = vadd.f32 %v678, %v815
      %v817 = vpop.f32.mrf.mxu0
      %v818 = vadd.f32 %v680, %v817
      %819 = vmatmul.bf16.gmra.mxu0 %v724
      %v820 = vpop.f32.mrf.mxu0
      %v821 = vadd.f32 %v683, %v820
      %v822 = vpop.f32.mrf.mxu0
      %v823 = vadd.f32 %v685, %v822
      %824 = vmatmul.bf16.gmra.mxu0 %v726
      %v825 = vpop.f32.mrf.mxu0
      %v826 = vadd.f32 %v688, %v825
      %v827 = vpop.f32.mrf.mxu0
      %v828 = vadd.f32 %v690, %v827
      %829 = vdwg.mxu0
      %v830 = vld [vmem:[%s232] sm:$0xe]
      %s831 = scalar_lea.vmem %s239, 4
      %v832 = vld [vmem:[%s831] sm:$0x3]
      %v834 = vunpack.c.l.b16 %v830
      %v835 = vpack.c.b16 %v330, %v834
      %vm836 = vcmask 1046528
      %v837 = vrot.slane %v835, 1
      %v838 = vrot.slane %v367, 1
      %v839 = vsel %vm836, %v837, %v838
      %v840 = vrot.slane %v368, 1
      %v841 = vsel %vm836, %v838, %v840
      %v842 = vrot.slane %v369, 1
      %v843 = vsel %vm836, %v840, %v842
      %v844 = vrot.slane %v370, 1
      %v845 = vsel %vm836, %v842, %v844
      %v846 = vrot.slane %v371, 1
      %v847 = vsel %vm836, %v844, %v846
      %v848 = vrot.slane %v372, 1
      %v849 = vsel %vm836, %v846, %v848
      %v850 = vrot.slane %v373, 1
      %v851 = vsel %vm836, %v848, %v850
      %v852 = vrot.slane %v374, 1
      %v853 = vsel %vm836, %v850, %v852
      %v854 = vrot.slane %v375, 1
      %v855 = vsel %vm836, %v852, %v854
      %v856 = vrot.slane %v376, 1
      %v857 = vsel %vm836, %v854, %v856
      %v858 = vrot.slane %v377, 1
      %v859 = vsel %vm836, %v856, %v858
      %v860 = vrot.slane %v378, 1
      %v861 = vsel %vm836, %v858, %v860
      %v862 = vrot.slane %v379, 1
      %v863 = vsel %vm836, %v860, %v862
      %v864 = vrot.slane %v380, 1
      %v865 = vsel %vm836, %v862, %v864
      %v866 = vrot.slane %v381, 1
      %v867 = vsel %vm836, %v864, %v866
      %v868 = vrot.slane %v382, 1
      %v869 = vsel %vm836, %v866, %v868
      %v870 = vrot.slane %v383, 1
      %v871 = vsel %vm836, %v868, %v870
      %v872 = vrot.slane %v384, 1
      %v873 = vsel %vm836, %v870, %v872
      %v875 = vsel %vm534, %v839, 0
      %v878 = vsel %vm534, %v841, 0
      %v881 = vsel %vm534, %v843, 0
      %v884 = vsel %vm534, %v845, 0
      %v887 = vsel %vm534, %v847, 0
      %v890 = vsel %vm534, %v849, 0
      %v893 = vsel %vm534, %v851, 0
      %v896 = vsel %vm534, %v853, 0
      %v899 = vsel %vm534, %v855, 0
      %v902 = vsel %vm534, %v857, 0
      %v905 = vsel %vm534, %v859, 0
      %v908 = vsel %vm534, %v861, 0
      %v911 = vsel %vm534, %v863, 0
      %v914 = vsel %vm534, %v865, 0
      %v917 = vsel %vm534, %v867, 0
      %v920 = vsel %vm534, %v869, 0
      %v923 = vsel %vm534, %v871, 0
      %v926 = vsel %vm534, %v873, 0
      %v929 = vsel %vm589, %v832, 0
      %931 = vmatpush.bf16.msra.mxu0 0
      %932 = vmatpush.bf16.msra.mxu0 0
      %933 = vmatpush.bf16.msra.mxu0 0
      %934 = vmatpush.bf16.msra.mxu0 0
      %935 = vmatpush.bf16.msra.mxu0 0
      %936 = vmatpush.bf16.msra.mxu0 0
      %937 = vmatpush.bf16.msra.mxu0 0
      %938 = vmatpush.bf16.msra.mxu0 %v929
      %939 = vmatmul.bf16.gmra.mxu0 %v875
      %v940 = vpop.f32.mrf.mxu0
      %v941 = vadd.f32 0.0, %v940
      %v942 = vpop.f32.mrf.mxu0
      %v943 = vadd.f32 0.0, %v942
      %944 = vmatmul.bf16.gmra.mxu0 %v878
      %v945 = vpop.f32.mrf.mxu0
      %v946 = vadd.f32 0.0, %v945
      %v947 = vpop.f32.mrf.mxu0
      %v948 = vadd.f32 0.0, %v947
      %949 = vmatmul.bf16.gmra.mxu0 %v881
      %v950 = vpop.f32.mrf.mxu0
      %v951 = vadd.f32 0.0, %v950
      %v952 = vpop.f32.mrf.mxu0
      %v953 = vadd.f32 0.0, %v952
      %954 = vmatmul.bf16.gmra.mxu0 %v884
      %v955 = vpop.f32.mrf.mxu0
      %v956 = vadd.f32 0.0, %v955
      %v957 = vpop.f32.mrf.mxu0
      %v958 = vadd.f32 0.0, %v957
      %959 = vmatmul.bf16.gmra.mxu0 %v887
      %v960 = vpop.f32.mrf.mxu0
      %v961 = vadd.f32 0.0, %v960
      %v962 = vpop.f32.mrf.mxu0
      %v963 = vadd.f32 0.0, %v962
      %964 = vmatmul.bf16.gmra.mxu0 %v890
      %v965 = vpop.f32.mrf.mxu0
      %v966 = vadd.f32 0.0, %v965
      %v967 = vpop.f32.mrf.mxu0
      %v968 = vadd.f32 0.0, %v967
      %969 = vmatmul.bf16.gmra.mxu0 %v893
      %v970 = vpop.f32.mrf.mxu0
      %v971 = vadd.f32 0.0, %v970
      %v972 = vpop.f32.mrf.mxu0
      %v973 = vadd.f32 0.0, %v972
      %974 = vmatmul.bf16.gmra.mxu0 %v896
      %v975 = vpop.f32.mrf.mxu0
      %v976 = vadd.f32 0.0, %v975
      %v977 = vpop.f32.mrf.mxu0
      %v978 = vadd.f32 0.0, %v977
      %979 = vmatmul.bf16.gmra.mxu0 %v899
      %v980 = vpop.f32.mrf.mxu0
      %v981 = vadd.f32 0.0, %v980
      %v982 = vpop.f32.mrf.mxu0
      %v983 = vadd.f32 0.0, %v982
      %984 = vmatmul.bf16.gmra.mxu0 %v902
      %v985 = vpop.f32.mrf.mxu0
      %v986 = vadd.f32 0.0, %v985
      %v987 = vpop.f32.mrf.mxu0
      %v988 = vadd.f32 0.0, %v987
      %989 = vmatmul.bf16.gmra.mxu0 %v905
      %v990 = vpop.f32.mrf.mxu0
      %v991 = vadd.f32 0.0, %v990
      %v992 = vpop.f32.mrf.mxu0
      %v993 = vadd.f32 0.0, %v992
      %994 = vmatmul.bf16.gmra.mxu0 %v908
      %v995 = vpop.f32.mrf.mxu0
      %v996 = vadd.f32 0.0, %v995
      %v997 = vpop.f32.mrf.mxu0
      %v998 = vadd.f32 0.0, %v997
      %999 = vmatmul.bf16.gmra.mxu0 %v911
      %v1000 = vpop.f32.mrf.mxu0
      %v1001 = vadd.f32 0.0, %v1000
      %v1002 = vpop.f32.mrf.mxu0
      %v1003 = vadd.f32 0.0, %v1002
      %1004 = vmatmul.bf16.gmra.mxu0 %v914
      %v1005 = vpop.f32.mrf.mxu0
      %v1006 = vadd.f32 0.0, %v1005
      %v1007 = vpop.f32.mrf.mxu0
      %v1008 = vadd.f32 0.0, %v1007
      %1009 = vmatmul.bf16.gmra.mxu0 %v917
      %v1010 = vpop.f32.mrf.mxu0
      %v1011 = vadd.f32 0.0, %v1010
      %v1012 = vpop.f32.mrf.mxu0
      %v1013 = vadd.f32 0.0, %v1012
      %1014 = vmatmul.bf16.gmra.mxu0 %v920
      %v1015 = vpop.f32.mrf.mxu0
      %v1016 = vadd.f32 0.0, %v1015
      %v1017 = vpop.f32.mrf.mxu0
      %v1018 = vadd.f32 0.0, %v1017
      %1019 = vmatmul.bf16.gmra.mxu0 %v923
      %v1020 = vpop.f32.mrf.mxu0
      %v1021 = vadd.f32 0.0, %v1020
      %v1022 = vpop.f32.mrf.mxu0
      %v1023 = vadd.f32 0.0, %v1022
      %1024 = vmatmul.bf16.gmra.mxu0 %v926
      %v1025 = vpop.f32.mrf.mxu0
      %v1026 = vadd.f32 0.0, %v1025
      %v1027 = vpop.f32.mrf.mxu0
      %v1028 = vadd.f32 0.0, %v1027
      %1029 = vdwg.mxu0
      %v1030 = vadd.f32 %v741, %v941
      %v1031 = vadd.f32 %v743, %v943
      %v1032 = vadd.f32 %v746, %v946
      %v1033 = vadd.f32 %v748, %v948
      %v1034 = vadd.f32 %v751, %v951
      %v1035 = vadd.f32 %v753, %v953
      %v1036 = vadd.f32 %v756, %v956
      %v1037 = vadd.f32 %v758, %v958
      %v1038 = vadd.f32 %v761, %v961
      %v1039 = vadd.f32 %v763, %v963
      %v1040 = vadd.f32 %v766, %v966
      %v1041 = vadd.f32 %v768, %v968
      %v1042 = vadd.f32 %v771, %v971
      %v1043 = vadd.f32 %v773, %v973
      %v1044 = vadd.f32 %v776, %v976
      %v1045 = vadd.f32 %v778, %v978
      %v1046 = vadd.f32 %v781, %v981
      %v1047 = vadd.f32 %v783, %v983
      %v1048 = vadd.f32 %v786, %v986
      %v1049 = vadd.f32 %v788, %v988
      %v1050 = vadd.f32 %v791, %v991
      %v1051 = vadd.f32 %v793, %v993
      %v1052 = vadd.f32 %v796, %v996
      %v1053 = vadd.f32 %v798, %v998
      %v1054 = vadd.f32 %v801, %v1001
      %v1055 = vadd.f32 %v803, %v1003
      %v1056 = vadd.f32 %v806, %v1006
      %v1057 = vadd.f32 %v808, %v1008
      %v1058 = vadd.f32 %v811, %v1011
      %v1059 = vadd.f32 %v813, %v1013
      %v1060 = vadd.f32 %v816, %v1016
      %v1061 = vadd.f32 %v818, %v1018
      %v1062 = vadd.f32 %v821, %v1021
      %v1063 = vadd.f32 %v823, %v1023
      %v1064 = vadd.f32 %v826, %v1026
      %v1065 = vadd.f32 %v828, %v1028
      %v1066 = vld [vmem:[%s232 + $0x8] sm:$0xe]
      %v1067 = vld [vmem:[%s232 + $0xc] sm:$0xf]
      %v1068 = vld [vmem:[%s232 + $0x10] sm:$0xf]
      %v1069 = vld [vmem:[%s232 + $0x14] sm:$0xf]
      %v1070 = vld [vmem:[%s232 + $0x18] sm:$0xf]
      %v1071 = vld [vmem:[%s232 + $0x1c] sm:$0xf]
      %v1072 = vld [vmem:[%s232 + $0x20] sm:$0xf]
      %v1073 = vld [vmem:[%s232 + $0x24] sm:$0xf]
      %v1074 = vld [vmem:[%s232 + $0x28] sm:$0xf]
      %v1075 = vld [vmem:[%s232 + $0x2c] sm:$0xf]
      %v1076 = vld [vmem:[%s232 + $0x30] sm:$0xf]
      %v1077 = vld [vmem:[%s232 + $0x34] sm:$0xf]
      %v1078 = vld [vmem:[%s232 + $0x38] sm:$0xf]
      %v1079 = vld [vmem:[%s232 + $0x3c] sm:$0xf]
      %v1080 = vld [vmem:[%s232 + $0x40] sm:$0xf]
      %v1081 = vld [vmem:[%s232 + $0x44] sm:$0xf]
      %v1082 = vld [vmem:[%s232 + $0x48] sm:$0xf]
      %v1083 = vld [vmem:[%s232 + $0x4c] sm:$0xf]
      %v1084 = vld [vmem:[%s232 + $0x50] sm:$0xf]
      %v1085 = vld [vmem:[%s232 + $0x54] sm:$0xf]
      %v1086 = vld [vmem:[%s232 + $0x58] sm:$0xf]
      %v1087 = vld [vmem:[%s232 + $0x5c] sm:$0xf]
      %v1088 = vld [vmem:[%s232 + $0x60] sm:$0xf]
      %v1089 = vld [vmem:[%s232 + $0x64] sm:$0xf]
      %v1090 = vld [vmem:[%s232 + $0x68] sm:$0xf]
      %v1091 = vld [vmem:[%s232 + $0x6c] sm:$0xf]
      %v1092 = vld [vmem:[%s232 + $0x70] sm:$0xf]
      %v1093 = vld [vmem:[%s232 + $0x74] sm:$0xf]
      %v1094 = vld [vmem:[%s232 + $0x78] sm:$0xf]
      %v1095 = vld [vmem:[%s232 + $0x7c] sm:$0xf]
      %v1096 = vld [vmem:[%s232 + $0x80] sm:$0xf]
      %v1097 = vld [vmem:[%s232 + $0x84] sm:$0xf]
      %v1098 = vld [vmem:[%s232 + $0x88] sm:$0xf]
      %v1099 = vld [vmem:[%s232 + $0x8c] sm:$0xf]
      %v1100 = vld [vmem:[%s232 + $0x90] sm:$0xf]
      %v1101 = vld [vmem:[%s232 + $0x94] sm:$0xf]
      %v1102 = vld [vmem:[%s232 + $0x98] sm:$0x1]
      %s1103 = scalar_lea.vmem %s239, 6
      %v1104 = vld [vmem:[%s1103] sm:$0x3]
      %v1142 = vunpack.c.l.b16 %v1066
      %v1143 = vunpack.c.l.b16 %v1067
      %v1144 = vunpack.c.l.b16 %v1068
      %v1145 = vunpack.c.l.b16 %v1069
      %v1146 = vunpack.c.l.b16 %v1070
      %v1147 = vunpack.c.l.b16 %v1071
      %v1148 = vunpack.c.l.b16 %v1072
      %v1149 = vunpack.c.l.b16 %v1073
      %v1150 = vunpack.c.l.b16 %v1074
      %v1151 = vunpack.c.l.b16 %v1075
      %v1152 = vunpack.c.l.b16 %v1076
      %v1153 = vunpack.c.l.b16 %v1077
      %v1154 = vunpack.c.l.b16 %v1078
      %v1155 = vunpack.c.l.b16 %v1079
      %v1156 = vunpack.c.l.b16 %v1080
      %v1157 = vunpack.c.l.b16 %v1081
      %v1158 = vunpack.c.l.b16 %v1082
      %v1159 = vunpack.c.l.b16 %v1083
      %v1160 = vunpack.c.l.b16 %v1084
      %v1161 = vunpack.c.l.b16 %v1085
      %v1162 = vunpack.c.l.b16 %v1086
      %v1163 = vunpack.c.l.b16 %v1087
      %v1164 = vunpack.c.l.b16 %v1088
      %v1165 = vunpack.c.l.b16 %v1089
      %v1166 = vunpack.c.l.b16 %v1090
      %v1167 = vunpack.c.l.b16 %v1091
      %v1168 = vunpack.c.l.b16 %v1092
      %v1169 = vunpack.c.l.b16 %v1093
      %v1170 = vunpack.c.l.b16 %v1094
      %v1171 = vunpack.c.l.b16 %v1095
      %v1172 = vunpack.c.l.b16 %v1096
      %v1173 = vunpack.c.l.b16 %v1097
      %v1174 = vunpack.c.l.b16 %v1098
      %v1175 = vunpack.c.l.b16 %v1099
      %v1176 = vunpack.c.l.b16 %v1100
      %v1177 = vunpack.c.l.b16 %v1101
      %v1178 = vunpack.c.l.b16 %v1102
      %v1179 = vpack.c.b16 %v1143, %v1142
      %v1180 = vpack.c.b16 %v1145, %v1144
      %v1181 = vpack.c.b16 %v1147, %v1146
      %v1182 = vpack.c.b16 %v1149, %v1148
      %v1183 = vpack.c.b16 %v1151, %v1150
      %v1184 = vpack.c.b16 %v1153, %v1152
      %v1185 = vpack.c.b16 %v1155, %v1154
      %v1186 = vpack.c.b16 %v1157, %v1156
      %v1187 = vpack.c.b16 %v1159, %v1158
      %v1188 = vpack.c.b16 %v1161, %v1160
      %v1189 = vpack.c.b16 %v1163, %v1162
      %v1190 = vpack.c.b16 %v1165, %v1164
      %v1191 = vpack.c.b16 %v1167, %v1166
      %v1192 = vpack.c.b16 %v1169, %v1168
      %v1193 = vpack.c.b16 %v1171, %v1170
      %v1194 = vpack.c.b16 %v1173, %v1172
      %v1195 = vpack.c.b16 %v1175, %v1174
      %v1196 = vpack.c.b16 %v1177, %v1176
      %v1197 = vpack.c.b16 %v1178, %v1178
      %v1198 = vrot.slane %v1179, 1
      %v1199 = vrot.slane %v1180, 1
      %v1200 = vsel %vm836, %v1198, %v1199
      %v1201 = vrot.slane %v1181, 1
      %v1202 = vsel %vm836, %v1199, %v1201
      %v1203 = vrot.slane %v1182, 1
      %v1204 = vsel %vm836, %v1201, %v1203
      %v1205 = vrot.slane %v1183, 1
      %v1206 = vsel %vm836, %v1203, %v1205
      %v1207 = vrot.slane %v1184, 1
      %v1208 = vsel %vm836, %v1205, %v1207
      %v1209 = vrot.slane %v1185, 1
      %v1210 = vsel %vm836, %v1207, %v1209
      %v1211 = vrot.slane %v1186, 1
      %v1212 = vsel %vm836, %v1209, %v1211
      %v1213 = vrot.slane %v1187, 1
      %v1214 = vsel %vm836, %v1211, %v1213
      %v1215 = vrot.slane %v1188, 1
      %v1216 = vsel %vm836, %v1213, %v1215
      %v1217 = vrot.slane %v1189, 1
      %v1218 = vsel %vm836, %v1215, %v1217
      %v1219 = vrot.slane %v1190, 1
      %v1220 = vsel %vm836, %v1217, %v1219
      %v1221 = vrot.slane %v1191, 1
      %v1222 = vsel %vm836, %v1219, %v1221
      %v1223 = vrot.slane %v1192, 1
      %v1224 = vsel %vm836, %v1221, %v1223
      %v1225 = vrot.slane %v1193, 1
      %v1226 = vsel %vm836, %v1223, %v1225
      %v1227 = vrot.slane %v1194, 1
      %v1228 = vsel %vm836, %v1225, %v1227
      %v1229 = vrot.slane %v1195, 1
      %v1230 = vsel %vm836, %v1227, %v1229
      %v1231 = vrot.slane %v1196, 1
      %v1232 = vsel %vm836, %v1229, %v1231
      %v1233 = vrot.slane %v1197, 1
      %v1234 = vsel %vm836, %v1231, %v1233
      %v1236 = vsel %vm534, %v1200, 0
      %v1239 = vsel %vm534, %v1202, 0
      %v1242 = vsel %vm534, %v1204, 0
      %v1245 = vsel %vm534, %v1206, 0
      %v1248 = vsel %vm534, %v1208, 0
      %v1251 = vsel %vm534, %v1210, 0
      %v1254 = vsel %vm534, %v1212, 0
      %v1257 = vsel %vm534, %v1214, 0
      %v1260 = vsel %vm534, %v1216, 0
      %v1263 = vsel %vm534, %v1218, 0
      %v1266 = vsel %vm534, %v1220, 0
      %v1269 = vsel %vm534, %v1222, 0
      %v1272 = vsel %vm534, %v1224, 0
      %v1275 = vsel %vm534, %v1226, 0
      %v1278 = vsel %vm534, %v1228, 0
      %v1281 = vsel %vm534, %v1230, 0
      %v1284 = vsel %vm534, %v1232, 0
      %v1287 = vsel %vm534, %v1234, 0
      %v1290 = vsel %vm589, %v1104, 0
      %1292 = vmatpush.bf16.msra.mxu0 0
      %1293 = vmatpush.bf16.msra.mxu0 0
      %1294 = vmatpush.bf16.msra.mxu0 0
      %1295 = vmatpush.bf16.msra.mxu0 0
      %1296 = vmatpush.bf16.msra.mxu0 0
      %1297 = vmatpush.bf16.msra.mxu0 0
      %1298 = vmatpush.bf16.msra.mxu0 0
      %1299 = vmatpush.bf16.msra.mxu0 %v1290
      %1300 = vmatmul.bf16.gmra.mxu0 %v1236
      %v1301 = vpop.f32.mrf.mxu0
      %v1302 = vadd.f32 0.0, %v1301
      %v1303 = vpop.f32.mrf.mxu0
      %v1304 = vadd.f32 0.0, %v1303
      %1305 = vmatmul.bf16.gmra.mxu0 %v1239
      %v1306 = vpop.f32.mrf.mxu0
      %v1307 = vadd.f32 0.0, %v1306
      %v1308 = vpop.f32.mrf.mxu0
      %v1309 = vadd.f32 0.0, %v1308
      %1310 = vmatmul.bf16.gmra.mxu0 %v1242
      %v1311 = vpop.f32.mrf.mxu0
      %v1312 = vadd.f32 0.0, %v1311
      %v1313 = vpop.f32.mrf.mxu0
      %v1314 = vadd.f32 0.0, %v1313
      %1315 = vmatmul.bf16.gmra.mxu0 %v1245
      %v1316 = vpop.f32.mrf.mxu0
      %v1317 = vadd.f32 0.0, %v1316
      %v1318 = vpop.f32.mrf.mxu0
      %v1319 = vadd.f32 0.0, %v1318
      %1320 = vmatmul.bf16.gmra.mxu0 %v1248
      %v1321 = vpop.f32.mrf.mxu0
      %v1322 = vadd.f32 0.0, %v1321
      %v1323 = vpop.f32.mrf.mxu0
      %v1324 = vadd.f32 0.0, %v1323
      %1325 = vmatmul.bf16.gmra.mxu0 %v1251
      %v1326 = vpop.f32.mrf.mxu0
      %v1327 = vadd.f32 0.0, %v1326
      %v1328 = vpop.f32.mrf.mxu0
      %v1329 = vadd.f32 0.0, %v1328
      %1330 = vmatmul.bf16.gmra.mxu0 %v1254
      %v1331 = vpop.f32.mrf.mxu0
      %v1332 = vadd.f32 0.0, %v1331
      %v1333 = vpop.f32.mrf.mxu0
      %v1334 = vadd.f32 0.0, %v1333
      %1335 = vmatmul.bf16.gmra.mxu0 %v1257
      %v1336 = vpop.f32.mrf.mxu0
      %v1337 = vadd.f32 0.0, %v1336
      %v1338 = vpop.f32.mrf.mxu0
      %v1339 = vadd.f32 0.0, %v1338
      %1340 = vmatmul.bf16.gmra.mxu0 %v1260
      %v1341 = vpop.f32.mrf.mxu0
      %v1342 = vadd.f32 0.0, %v1341
      %v1343 = vpop.f32.mrf.mxu0
      %v1344 = vadd.f32 0.0, %v1343
      %1345 = vmatmul.bf16.gmra.mxu0 %v1263
      %v1346 = vpop.f32.mrf.mxu0
      %v1347 = vadd.f32 0.0, %v1346
      %v1348 = vpop.f32.mrf.mxu0
      %v1349 = vadd.f32 0.0, %v1348
      %1350 = vmatmul.bf16.gmra.mxu0 %v1266
      %v1351 = vpop.f32.mrf.mxu0
      %v1352 = vadd.f32 0.0, %v1351
      %v1353 = vpop.f32.mrf.mxu0
      %v1354 = vadd.f32 0.0, %v1353
      %1355 = vmatmul.bf16.gmra.mxu0 %v1269
      %v1356 = vpop.f32.mrf.mxu0
      %v1357 = vadd.f32 0.0, %v1356
      %v1358 = vpop.f32.mrf.mxu0
      %v1359 = vadd.f32 0.0, %v1358
      %1360 = vmatmul.bf16.gmra.mxu0 %v1272
      %v1361 = vpop.f32.mrf.mxu0
      %v1362 = vadd.f32 0.0, %v1361
      %v1363 = vpop.f32.mrf.mxu0
      %v1364 = vadd.f32 0.0, %v1363
      %1365 = vmatmul.bf16.gmra.mxu0 %v1275
      %v1366 = vpop.f32.mrf.mxu0
      %v1367 = vadd.f32 0.0, %v1366
      %v1368 = vpop.f32.mrf.mxu0
      %v1369 = vadd.f32 0.0, %v1368
      %1370 = vmatmul.bf16.gmra.mxu0 %v1278
      %v1371 = vpop.f32.mrf.mxu0
      %v1372 = vadd.f32 0.0, %v1371
      %v1373 = vpop.f32.mrf.mxu0
      %v1374 = vadd.f32 0.0, %v1373
      %1375 = vmatmul.bf16.gmra.mxu0 %v1281
      %v1376 = vpop.f32.mrf.mxu0
      %v1377 = vadd.f32 0.0, %v1376
      %v1378 = vpop.f32.mrf.mxu0
      %v1379 = vadd.f32 0.0, %v1378
      %1380 = vmatmul.bf16.gmra.mxu0 %v1284
      %v1381 = vpop.f32.mrf.mxu0
      %v1382 = vadd.f32 0.0, %v1381
      %v1383 = vpop.f32.mrf.mxu0
      %v1384 = vadd.f32 0.0, %v1383
      %1385 = vmatmul.bf16.gmra.mxu0 %v1287
      %v1386 = vpop.f32.mrf.mxu0
      %v1387 = vadd.f32 0.0, %v1386
      %v1388 = vpop.f32.mrf.mxu0
      %v1389 = vadd.f32 0.0, %v1388
      %1390 = vdwg.mxu0
      %v1391 = vadd.f32 %v1030, %v1302
      %v1392 = vadd.f32 %v1031, %v1304
      %v1393 = vadd.f32 %v1032, %v1307
      %v1394 = vadd.f32 %v1033, %v1309
      %v1395 = vadd.f32 %v1034, %v1312
      %v1396 = vadd.f32 %v1035, %v1314
      %v1397 = vadd.f32 %v1036, %v1317
      %v1398 = vadd.f32 %v1037, %v1319
      %v1399 = vadd.f32 %v1038, %v1322
      %v1400 = vadd.f32 %v1039, %v1324
      %v1401 = vadd.f32 %v1040, %v1327
      %v1402 = vadd.f32 %v1041, %v1329
      %v1403 = vadd.f32 %v1042, %v1332
      %v1404 = vadd.f32 %v1043, %v1334
      %v1405 = vadd.f32 %v1044, %v1337
      %v1406 = vadd.f32 %v1045, %v1339
      %v1407 = vadd.f32 %v1046, %v1342
      %v1408 = vadd.f32 %v1047, %v1344
      %v1409 = vadd.f32 %v1048, %v1347
      %v1410 = vadd.f32 %v1049, %v1349
      %v1411 = vadd.f32 %v1050, %v1352
      %v1412 = vadd.f32 %v1051, %v1354
      %v1413 = vadd.f32 %v1052, %v1357
      %v1414 = vadd.f32 %v1053, %v1359
      %v1415 = vadd.f32 %v1054, %v1362
      %v1416 = vadd.f32 %v1055, %v1364
      %v1417 = vadd.f32 %v1056, %v1367
      %v1418 = vadd.f32 %v1057, %v1369
      %v1419 = vadd.f32 %v1058, %v1372
      %v1420 = vadd.f32 %v1059, %v1374
      %v1421 = vadd.f32 %v1060, %v1377
      %v1422 = vadd.f32 %v1061, %v1379
      %v1423 = vadd.f32 %v1062, %v1382
      %v1424 = vadd.f32 %v1063, %v1384
      %v1425 = vadd.f32 %v1064, %v1387
      %v1426 = vadd.f32 %v1065, %v1389
      %v1427 = vld [vmem:[%s232 + $0x98] sm:$0x3]
      %s1428 = scalar_lea.vmem %s239, 8
      %v1429 = vld [vmem:[%s1428] sm:$0x3]
      %v1431 = vunpack.c.l.b16 %v1427
      %v1432 = vpack.c.b16 %v1431, %v1431
      %vm1433 = vsmask.f32 6400
      %v1435 = vshrl.u32 %v1179, 16
      %v1437 = vrot.slane %v1435, 1
      %v1438 = vshll.u32 %v1179, 16
      %v1440 = vrot.slane %v1438, 2
      %v1441 = vor.u32 %v1437, %v1440
      %v1443 = vshrl.u32 %v1180, 16
      %v1445 = vrot.slane %v1443, 1
      %v1446 = vshll.u32 %v1180, 16
      %v1448 = vrot.slane %v1446, 2
      %v1449 = vor.u32 %v1445, %v1448
      %v1450 = vsel %vm1433, %v1441, %v1449
      %v1452 = vshrl.u32 %v1181, 16
      %v1454 = vrot.slane %v1452, 1
      %v1455 = vshll.u32 %v1181, 16
      %v1457 = vrot.slane %v1455, 2
      %v1458 = vor.u32 %v1454, %v1457
      %v1459 = vsel %vm1433, %v1449, %v1458
      %v1461 = vshrl.u32 %v1182, 16
      %v1463 = vrot.slane %v1461, 1
      %v1464 = vshll.u32 %v1182, 16
      %v1466 = vrot.slane %v1464, 2
      %v1467 = vor.u32 %v1463, %v1466
      %v1468 = vsel %vm1433, %v1458, %v1467
      %v1470 = vshrl.u32 %v1183, 16
      %v1472 = vrot.slane %v1470, 1
      %v1473 = vshll.u32 %v1183, 16
      %v1475 = vrot.slane %v1473, 2
      %v1476 = vor.u32 %v1472, %v1475
      %v1477 = vsel %vm1433, %v1467, %v1476
      %v1479 = vshrl.u32 %v1184, 16
      %v1481 = vrot.slane %v1479, 1
      %v1482 = vshll.u32 %v1184, 16
      %v1484 = vrot.slane %v1482, 2
      %v1485 = vor.u32 %v1481, %v1484
      %v1486 = vsel %vm1433, %v1476, %v1485
      %v1488 = vshrl.u32 %v1185, 16
      %v1490 = vrot.slane %v1488, 1
      %v1491 = vshll.u32 %v1185, 16
      %v1493 = vrot.slane %v1491, 2
      %v1494 = vor.u32 %v1490, %v1493
      %v1495 = vsel %vm1433, %v1485, %v1494
      %v1497 = vshrl.u32 %v1186, 16
      %v1499 = vrot.slane %v1497, 1
      %v1500 = vshll.u32 %v1186, 16
      %v1502 = vrot.slane %v1500, 2
      %v1503 = vor.u32 %v1499, %v1502
      %v1504 = vsel %vm1433, %v1494, %v1503
      %v1506 = vshrl.u32 %v1187, 16
      %v1508 = vrot.slane %v1506, 1
      %v1509 = vshll.u32 %v1187, 16
      %v1511 = vrot.slane %v1509, 2
      %v1512 = vor.u32 %v1508, %v1511
      %v1513 = vsel %vm1433, %v1503, %v1512
      %v1515 = vshrl.u32 %v1188, 16
      %v1517 = vrot.slane %v1515, 1
      %v1518 = vshll.u32 %v1188, 16
      %v1520 = vrot.slane %v1518, 2
      %v1521 = vor.u32 %v1517, %v1520
      %v1522 = vsel %vm1433, %v1512, %v1521
      %v1524 = vshrl.u32 %v1189, 16
      %v1526 = vrot.slane %v1524, 1
      %v1527 = vshll.u32 %v1189, 16
      %v1529 = vrot.slane %v1527, 2
      %v1530 = vor.u32 %v1526, %v1529
      %v1531 = vsel %vm1433, %v1521, %v1530
      %v1533 = vshrl.u32 %v1190, 16
      %v1535 = vrot.slane %v1533, 1
      %v1536 = vshll.u32 %v1190, 16
      %v1538 = vrot.slane %v1536, 2
      %v1539 = vor.u32 %v1535, %v1538
      %v1540 = vsel %vm1433, %v1530, %v1539
      %v1542 = vshrl.u32 %v1191, 16
      %v1544 = vrot.slane %v1542, 1
      %v1545 = vshll.u32 %v1191, 16
      %v1547 = vrot.slane %v1545, 2
      %v1548 = vor.u32 %v1544, %v1547
      %v1549 = vsel %vm1433, %v1539, %v1548
      %v1551 = vshrl.u32 %v1192, 16
      %v1553 = vrot.slane %v1551, 1
      %v1554 = vshll.u32 %v1192, 16
      %v1556 = vrot.slane %v1554, 2
      %v1557 = vor.u32 %v1553, %v1556
      %v1558 = vsel %vm1433, %v1548, %v1557
      %v1560 = vshrl.u32 %v1193, 16
      %v1562 = vrot.slane %v1560, 1
      %v1563 = vshll.u32 %v1193, 16
      %v1565 = vrot.slane %v1563, 2
      %v1566 = vor.u32 %v1562, %v1565
      %v1567 = vsel %vm1433, %v1557, %v1566
      %v1569 = vshrl.u32 %v1194, 16
      %v1571 = vrot.slane %v1569, 1
      %v1572 = vshll.u32 %v1194, 16
      %v1574 = vrot.slane %v1572, 2
      %v1575 = vor.u32 %v1571, %v1574
      %v1576 = vsel %vm1433, %v1566, %v1575
      %v1578 = vshrl.u32 %v1195, 16
      %v1580 = vrot.slane %v1578, 1
      %v1581 = vshll.u32 %v1195, 16
      %v1583 = vrot.slane %v1581, 2
      %v1584 = vor.u32 %v1580, %v1583
      %v1585 = vsel %vm1433, %v1575, %v1584
      %v1587 = vshrl.u32 %v1196, 16
      %v1589 = vrot.slane %v1587, 1
      %v1590 = vshll.u32 %v1196, 16
      %v1592 = vrot.slane %v1590, 2
      %v1593 = vor.u32 %v1589, %v1592
      %v1594 = vsel %vm1433, %v1584, %v1593
      %v1596 = vshrl.u32 %v1432, 16
      %v1598 = vrot.slane %v1596, 1
      %v1599 = vshll.u32 %v1432, 16
      %v1601 = vrot.slane %v1599, 2
      %v1602 = vor.u32 %v1598, %v1601
      %v1603 = vsel %vm1433, %v1593, %v1602
      %v1605 = vsel %vm534, %v1450, 0
      %v1608 = vsel %vm534, %v1459, 0
      %v1611 = vsel %vm534, %v1468, 0
      %v1614 = vsel %vm534, %v1477, 0
      %v1617 = vsel %vm534, %v1486, 0
      %v1620 = vsel %vm534, %v1495, 0
      %v1623 = vsel %vm534, %v1504, 0
      %v1626 = vsel %vm534, %v1513, 0
      %v1629 = vsel %vm534, %v1522, 0
      %v1632 = vsel %vm534, %v1531, 0
      %v1635 = vsel %vm534, %v1540, 0
      %v1638 = vsel %vm534, %v1549, 0
      %v1641 = vsel %vm534, %v1558, 0
      %v1644 = vsel %vm534, %v1567, 0
      %v1647 = vsel %vm534, %v1576, 0
      %v1650 = vsel %vm534, %v1585, 0
      %v1653 = vsel %vm534, %v1594, 0
      %v1656 = vsel %vm534, %v1603, 0
      %v1659 = vsel %vm589, %v1429, 0
      %1661 = vmatpush.bf16.msra.mxu0 0
      %1662 = vmatpush.bf16.msra.mxu0 0
      %1663 = vmatpush.bf16.msra.mxu0 0
      %1664 = vmatpush.bf16.msra.mxu0 0
      %1665 = vmatpush.bf16.msra.mxu0 0
      %1666 = vmatpush.bf16.msra.mxu0 0
      %1667 = vmatpush.bf16.msra.mxu0 0
      %1668 = vmatpush.bf16.msra.mxu0 %v1659
      %1669 = vmatmul.bf16.gmra.mxu0 %v1605
      %v1670 = vpop.f32.mrf.mxu0
      %v1671 = vadd.f32 0.0, %v1670
      %v1672 = vpop.f32.mrf.mxu0
      %v1673 = vadd.f32 0.0, %v1672
      %1674 = vmatmul.bf16.gmra.mxu0 %v1608
      %v1675 = vpop.f32.mrf.mxu0
      %v1676 = vadd.f32 0.0, %v1675
      %v1677 = vpop.f32.mrf.mxu0
      %v1678 = vadd.f32 0.0, %v1677
      %1679 = vmatmul.bf16.gmra.mxu0 %v1611
      %v1680 = vpop.f32.mrf.mxu0
      %v1681 = vadd.f32 0.0, %v1680
      %v1682 = vpop.f32.mrf.mxu0
      %v1683 = vadd.f32 0.0, %v1682
      %1684 = vmatmul.bf16.gmra.mxu0 %v1614
      %v1685 = vpop.f32.mrf.mxu0
      %v1686 = vadd.f32 0.0, %v1685
      %v1687 = vpop.f32.mrf.mxu0
      %v1688 = vadd.f32 0.0, %v1687
      %1689 = vmatmul.bf16.gmra.mxu0 %v1617
      %v1690 = vpop.f32.mrf.mxu0
      %v1691 = vadd.f32 0.0, %v1690
      %v1692 = vpop.f32.mrf.mxu0
      %v1693 = vadd.f32 0.0, %v1692
      %1694 = vmatmul.bf16.gmra.mxu0 %v1620
      %v1695 = vpop.f32.mrf.mxu0
      %v1696 = vadd.f32 0.0, %v1695
      %v1697 = vpop.f32.mrf.mxu0
      %v1698 = vadd.f32 0.0, %v1697
      %1699 = vmatmul.bf16.gmra.mxu0 %v1623
      %v1700 = vpop.f32.mrf.mxu0
      %v1701 = vadd.f32 0.0, %v1700
      %v1702 = vpop.f32.mrf.mxu0
      %v1703 = vadd.f32 0.0, %v1702
      %1704 = vmatmul.bf16.gmra.mxu0 %v1626
      %v1705 = vpop.f32.mrf.mxu0
      %v1706 = vadd.f32 0.0, %v1705
      %v1707 = vpop.f32.mrf.mxu0
      %v1708 = vadd.f32 0.0, %v1707
      %1709 = vmatmul.bf16.gmra.mxu0 %v1629
      %v1710 = vpop.f32.mrf.mxu0
      %v1711 = vadd.f32 0.0, %v1710
      %v1712 = vpop.f32.mrf.mxu0
      %v1713 = vadd.f32 0.0, %v1712
      %1714 = vmatmul.bf16.gmra.mxu0 %v1632
      %v1715 = vpop.f32.mrf.mxu0
      %v1716 = vadd.f32 0.0, %v1715
      %v1717 = vpop.f32.mrf.mxu0
      %v1718 = vadd.f32 0.0, %v1717
      %1719 = vmatmul.bf16.gmra.mxu0 %v1635
      %v1720 = vpop.f32.mrf.mxu0
      %v1721 = vadd.f32 0.0, %v1720
      %v1722 = vpop.f32.mrf.mxu0
      %v1723 = vadd.f32 0.0, %v1722
      %1724 = vmatmul.bf16.gmra.mxu0 %v1638
      %v1725 = vpop.f32.mrf.mxu0
      %v1726 = vadd.f32 0.0, %v1725
      %v1727 = vpop.f32.mrf.mxu0
      %v1728 = vadd.f32 0.0, %v1727
      %1729 = vmatmul.bf16.gmra.mxu0 %v1641
      %v1730 = vpop.f32.mrf.mxu0
      %v1731 = vadd.f32 0.0, %v1730
      %v1732 = vpop.f32.mrf.mxu0
      %v1733 = vadd.f32 0.0, %v1732
      %1734 = vmatmul.bf16.gmra.mxu0 %v1644
      %v1735 = vpop.f32.mrf.mxu0
      %v1736 = vadd.f32 0.0, %v1735
      %v1737 = vpop.f32.mrf.mxu0
      %v1738 = vadd.f32 0.0, %v1737
      %1739 = vmatmul.bf16.gmra.mxu0 %v1647
      %v1740 = vpop.f32.mrf.mxu0
      %v1741 = vadd.f32 0.0, %v1740
      %v1742 = vpop.f32.mrf.mxu0
      %v1743 = vadd.f32 0.0, %v1742
      %1744 = vmatmul.bf16.gmra.mxu0 %v1650
      %v1745 = vpop.f32.mrf.mxu0
      %v1746 = vadd.f32 0.0, %v1745
      %v1747 = vpop.f32.mrf.mxu0
      %v1748 = vadd.f32 0.0, %v1747
      %1749 = vmatmul.bf16.gmra.mxu0 %v1653
      %v1750 = vpop.f32.mrf.mxu0
      %v1751 = vadd.f32 0.0, %v1750
      %v1752 = vpop.f32.mrf.mxu0
      %v1753 = vadd.f32 0.0, %v1752
      %1754 = vmatmul.bf16.gmra.mxu0 %v1656
      %v1755 = vpop.f32.mrf.mxu0
      %v1756 = vadd.f32 0.0, %v1755
      %v1757 = vpop.f32.mrf.mxu0
      %v1758 = vadd.f32 0.0, %v1757
      %1759 = vdwg.mxu0
      %v1760 = vadd.f32 %v1391, %v1671
      %v1761 = vadd.f32 %v1392, %v1673
      %v1762 = vadd.f32 %v1393, %v1676
      %v1763 = vadd.f32 %v1394, %v1678
      %v1764 = vadd.f32 %v1395, %v1681
      %v1765 = vadd.f32 %v1396, %v1683
      %v1766 = vadd.f32 %v1397, %v1686
      %v1767 = vadd.f32 %v1398, %v1688
      %v1768 = vadd.f32 %v1399, %v1691
      %v1769 = vadd.f32 %v1400, %v1693
      %v1770 = vadd.f32 %v1401, %v1696
      %v1771 = vadd.f32 %v1402, %v1698
      %v1772 = vadd.f32 %v1403, %v1701
      %v1773 = vadd.f32 %v1404, %v1703
      %v1774 = vadd.f32 %v1405, %v1706
      %v1775 = vadd.f32 %v1406, %v1708
      %v1776 = vadd.f32 %v1407, %v1711
      %v1777 = vadd.f32 %v1408, %v1713
      %v1778 = vadd.f32 %v1409, %v1716
      %v1779 = vadd.f32 %v1410, %v1718
      %v1780 = vadd.f32 %v1411, %v1721
      %v1781 = vadd.f32 %v1412, %v1723
      %v1782 = vadd.f32 %v1413, %v1726
      %v1783 = vadd.f32 %v1414, %v1728
      %v1784 = vadd.f32 %v1415, %v1731
      %v1785 = vadd.f32 %v1416, %v1733
      %v1786 = vadd.f32 %v1417, %v1736
      %v1787 = vadd.f32 %v1418, %v1738
      %v1788 = vadd.f32 %v1419, %v1741
      %v1789 = vadd.f32 %v1420, %v1743
      %v1790 = vadd.f32 %v1421, %v1746
      %v1791 = vadd.f32 %v1422, %v1748
      %v1792 = vadd.f32 %v1423, %v1751
      %v1793 = vadd.f32 %v1424, %v1753
      %v1794 = vadd.f32 %v1425, %v1756
      %v1795 = vadd.f32 %v1426, %v1758
      %v1796 = vld [vmem:[%s232 + $0x8] sm:$0xc]
      %s1797 = scalar_lea.vmem %s239, 10
      %v1798 = vld [vmem:[%s1797] sm:$0x3]
      %v1800 = vunpack.c.l.b16 %v1796
      %v1801 = vpack.c.b16 %v1143, %v1800
      %vm1802 = vcmask 1045504
      %v1803 = vrot.slane %v1801, 2
      %v1804 = vrot.slane %v1180, 2
      %v1805 = vsel %vm1802, %v1803, %v1804
      %v1806 = vrot.slane %v1181, 2
      %v1807 = vsel %vm1802, %v1804, %v1806
      %v1808 = vrot.slane %v1182, 2
      %v1809 = vsel %vm1802, %v1806, %v1808
      %v1810 = vrot.slane %v1183, 2
      %v1811 = vsel %vm1802, %v1808, %v1810
      %v1812 = vrot.slane %v1184, 2
      %v1813 = vsel %vm1802, %v1810, %v1812
      %v1814 = vrot.slane %v1185, 2
      %v1815 = vsel %vm1802, %v1812, %v1814
      %v1816 = vrot.slane %v1186, 2
      %v1817 = vsel %vm1802, %v1814, %v1816
      %v1818 = vrot.slane %v1187, 2
      %v1819 = vsel %vm1802, %v1816, %v1818
      %v1820 = vrot.slane %v1188, 2
      %v1821 = vsel %vm1802, %v1818, %v1820
      %v1822 = vrot.slane %v1189, 2
      %v1823 = vsel %vm1802, %v1820, %v1822
      %v1824 = vrot.slane %v1190, 2
      %v1825 = vsel %vm1802, %v1822, %v1824
      %v1826 = vrot.slane %v1191, 2
      %v1827 = vsel %vm1802, %v1824, %v1826
      %v1828 = vrot.slane %v1192, 2
      %v1829 = vsel %vm1802, %v1826, %v1828
      %v1830 = vrot.slane %v1193, 2
      %v1831 = vsel %vm1802, %v1828, %v1830
      %v1832 = vrot.slane %v1194, 2
      %v1833 = vsel %vm1802, %v1830, %v1832
      %v1834 = vrot.slane %v1195, 2
      %v1835 = vsel %vm1802, %v1832, %v1834
      %v1836 = vrot.slane %v1196, 2
      %v1837 = vsel %vm1802, %v1834, %v1836
      %v1838 = vrot.slane %v1432, 2
      %v1839 = vsel %vm1802, %v1836, %v1838
      %v1841 = vsel %vm534, %v1805, 0
      %v1844 = vsel %vm534, %v1807, 0
      %v1847 = vsel %vm534, %v1809, 0
      %v1850 = vsel %vm534, %v1811, 0
      %v1853 = vsel %vm534, %v1813, 0
      %v1856 = vsel %vm534, %v1815, 0
      %v1859 = vsel %vm534, %v1817, 0
      %v1862 = vsel %vm534, %v1819, 0
      %v1865 = vsel %vm534, %v1821, 0
      %v1868 = vsel %vm534, %v1823, 0
      %v1871 = vsel %vm534, %v1825, 0
      %v1874 = vsel %vm534, %v1827, 0
      %v1877 = vsel %vm534, %v1829, 0
      %v1880 = vsel %vm534, %v1831, 0
      %v1883 = vsel %vm534, %v1833, 0
      %v1886 = vsel %vm534, %v1835, 0
      %v1889 = vsel %vm534, %v1837, 0
      %v1892 = vsel %vm534, %v1839, 0
      %v1895 = vsel %vm589, %v1798, 0
      %1897 = vmatpush.bf16.msra.mxu0 0
      %1898 = vmatpush.bf16.msra.mxu0 0
      %1899 = vmatpush.bf16.msra.mxu0 0
      %1900 = vmatpush.bf16.msra.mxu0 0
      %1901 = vmatpush.bf16.msra.mxu0 0
      %1902 = vmatpush.bf16.msra.mxu0 0
      %1903 = vmatpush.bf16.msra.mxu0 0
      %1904 = vmatpush.bf16.msra.mxu0 %v1895
      %1905 = vmatmul.bf16.gmra.mxu0 %v1841
      %v1906 = vpop.f32.mrf.mxu0
      %v1907 = vadd.f32 0.0, %v1906
      %v1908 = vpop.f32.mrf.mxu0
      %v1909 = vadd.f32 0.0, %v1908
      %1910 = vmatmul.bf16.gmra.mxu0 %v1844
      %v1911 = vpop.f32.mrf.mxu0
      %v1912 = vadd.f32 0.0, %v1911
      %v1913 = vpop.f32.mrf.mxu0
      %v1914 = vadd.f32 0.0, %v1913
      %1915 = vmatmul.bf16.gmra.mxu0 %v1847
      %v1916 = vpop.f32.mrf.mxu0
      %v1917 = vadd.f32 0.0, %v1916
      %v1918 = vpop.f32.mrf.mxu0
      %v1919 = vadd.f32 0.0, %v1918
      %1920 = vmatmul.bf16.gmra.mxu0 %v1850
      %v1921 = vpop.f32.mrf.mxu0
      %v1922 = vadd.f32 0.0, %v1921
      %v1923 = vpop.f32.mrf.mxu0
      %v1924 = vadd.f32 0.0, %v1923
      %1925 = vmatmul.bf16.gmra.mxu0 %v1853
      %v1926 = vpop.f32.mrf.mxu0
      %v1927 = vadd.f32 0.0, %v1926
      %v1928 = vpop.f32.mrf.mxu0
      %v1929 = vadd.f32 0.0, %v1928
      %1930 = vmatmul.bf16.gmra.mxu0 %v1856
      %v1931 = vpop.f32.mrf.mxu0
      %v1932 = vadd.f32 0.0, %v1931
      %v1933 = vpop.f32.mrf.mxu0
      %v1934 = vadd.f32 0.0, %v1933
      %1935 = vmatmul.bf16.gmra.mxu0 %v1859
      %v1936 = vpop.f32.mrf.mxu0
      %v1937 = vadd.f32 0.0, %v1936
      %v1938 = vpop.f32.mrf.mxu0
      %v1939 = vadd.f32 0.0, %v1938
      %1940 = vmatmul.bf16.gmra.mxu0 %v1862
      %v1941 = vpop.f32.mrf.mxu0
      %v1942 = vadd.f32 0.0, %v1941
      %v1943 = vpop.f32.mrf.mxu0
      %v1944 = vadd.f32 0.0, %v1943
      %1945 = vmatmul.bf16.gmra.mxu0 %v1865
      %v1946 = vpop.f32.mrf.mxu0
      %v1947 = vadd.f32 0.0, %v1946
      %v1948 = vpop.f32.mrf.mxu0
      %v1949 = vadd.f32 0.0, %v1948
      %1950 = vmatmul.bf16.gmra.mxu0 %v1868
      %v1951 = vpop.f32.mrf.mxu0
      %v1952 = vadd.f32 0.0, %v1951
      %v1953 = vpop.f32.mrf.mxu0
      %v1954 = vadd.f32 0.0, %v1953
      %1955 = vmatmul.bf16.gmra.mxu0 %v1871
      %v1956 = vpop.f32.mrf.mxu0
      %v1957 = vadd.f32 0.0, %v1956
      %v1958 = vpop.f32.mrf.mxu0
      %v1959 = vadd.f32 0.0, %v1958
      %1960 = vmatmul.bf16.gmra.mxu0 %v1874
      %v1961 = vpop.f32.mrf.mxu0
      %v1962 = vadd.f32 0.0, %v1961
      %v1963 = vpop.f32.mrf.mxu0
      %v1964 = vadd.f32 0.0, %v1963
      %1965 = vmatmul.bf16.gmra.mxu0 %v1877
      %v1966 = vpop.f32.mrf.mxu0
      %v1967 = vadd.f32 0.0, %v1966
      %v1968 = vpop.f32.mrf.mxu0
      %v1969 = vadd.f32 0.0, %v1968
      %1970 = vmatmul.bf16.gmra.mxu0 %v1880
      %v1971 = vpop.f32.mrf.mxu0
      %v1972 = vadd.f32 0.0, %v1971
      %v1973 = vpop.f32.mrf.mxu0
      %v1974 = vadd.f32 0.0, %v1973
      %1975 = vmatmul.bf16.gmra.mxu0 %v1883
      %v1976 = vpop.f32.mrf.mxu0
      %v1977 = vadd.f32 0.0, %v1976
      %v1978 = vpop.f32.mrf.mxu0
      %v1979 = vadd.f32 0.0, %v1978
      %1980 = vmatmul.bf16.gmra.mxu0 %v1886
      %v1981 = vpop.f32.mrf.mxu0
      %v1982 = vadd.f32 0.0, %v1981
      %v1983 = vpop.f32.mrf.mxu0
      %v1984 = vadd.f32 0.0, %v1983
      %1985 = vmatmul.bf16.gmra.mxu0 %v1889
      %v1986 = vpop.f32.mrf.mxu0
      %v1987 = vadd.f32 0.0, %v1986
      %v1988 = vpop.f32.mrf.mxu0
      %v1989 = vadd.f32 0.0, %v1988
      %1990 = vmatmul.bf16.gmra.mxu0 %v1892
      %v1991 = vpop.f32.mrf.mxu0
      %v1992 = vadd.f32 0.0, %v1991
      %v1993 = vpop.f32.mrf.mxu0
      %v1994 = vadd.f32 0.0, %v1993
      %1995 = vdwg.mxu0
      %v1996 = vadd.f32 %v1760, %v1907
      %v1997 = vadd.f32 %v1761, %v1909
      %v1998 = vadd.f32 %v1762, %v1912
      %v1999 = vadd.f32 %v1763, %v1914
      %v2000 = vadd.f32 %v1764, %v1917
      %v2001 = vadd.f32 %v1765, %v1919
      %v2002 = vadd.f32 %v1766, %v1922
      %v2003 = vadd.f32 %v1767, %v1924
      %v2004 = vadd.f32 %v1768, %v1927
      %v2005 = vadd.f32 %v1769, %v1929
      %v2006 = vadd.f32 %v1770, %v1932
      %v2007 = vadd.f32 %v1771, %v1934
      %v2008 = vadd.f32 %v1772, %v1937
      %v2009 = vadd.f32 %v1773, %v1939
      %v2010 = vadd.f32 %v1774, %v1942
      %v2011 = vadd.f32 %v1775, %v1944
      %v2012 = vadd.f32 %v1776, %v1947
      %v2013 = vadd.f32 %v1777, %v1949
      %v2014 = vadd.f32 %v1778, %v1952
      %v2015 = vadd.f32 %v1779, %v1954
      %v2016 = vadd.f32 %v1780, %v1957
      %v2017 = vadd.f32 %v1781, %v1959
      %v2018 = vadd.f32 %v1782, %v1962
      %v2019 = vadd.f32 %v1783, %v1964
      %v2020 = vadd.f32 %v1784, %v1967
      %v2021 = vadd.f32 %v1785, %v1969
      %v2022 = vadd.f32 %v1786, %v1972
      %v2023 = vadd.f32 %v1787, %v1974
      %v2024 = vadd.f32 %v1788, %v1977
      %v2025 = vadd.f32 %v1789, %v1979
      %v2026 = vadd.f32 %v1790, %v1982
      %v2027 = vadd.f32 %v1791, %v1984
      %v2028 = vadd.f32 %v1792, %v1987
      %v2029 = vadd.f32 %v1793, %v1989
      %v2030 = vadd.f32 %v1794, %v1992
      %v2031 = vadd.f32 %v1795, %v1994
      %v2032 = vld [vmem:[%s232 + $0x10] sm:$0xc]
      %v2033 = vld [vmem:[%s232 + $0x14] sm:$0xf]
      %v2034 = vld [vmem:[%s232 + $0x18] sm:$0xf]
      %v2035 = vld [vmem:[%s232 + $0x1c] sm:$0xf]
      %v2036 = vld [vmem:[%s232 + $0x20] sm:$0xf]
      %v2037 = vld [vmem:[%s232 + $0x24] sm:$0xf]
      %v2038 = vld [vmem:[%s232 + $0x28] sm:$0xf]
      %v2039 = vld [vmem:[%s232 + $0x2c] sm:$0xf]
      %v2040 = vld [vmem:[%s232 + $0x30] sm:$0xf]
      %v2041 = vld [vmem:[%s232 + $0x34] sm:$0xf]
      %v2042 = vld [vmem:[%s232 + $0x38] sm:$0xf]
      %v2043 = vld [vmem:[%s232 + $0x3c] sm:$0xf]
      %v2044 = vld [vmem:[%s232 + $0x40] sm:$0xf]
      %v2045 = vld [vmem:[%s232 + $0x44] sm:$0xf]
      %v2046 = vld [vmem:[%s232 + $0x48] sm:$0xf]
      %v2047 = vld [vmem:[%s232 + $0x4c] sm:$0xf]
      %v2048 = vld [vmem:[%s232 + $0x50] sm:$0xf]
      %v2049 = vld [vmem:[%s232 + $0x54] sm:$0xf]
      %v2050 = vld [vmem:[%s232 + $0x58] sm:$0xf]
      %v2051 = vld [vmem:[%s232 + $0x5c] sm:$0xf]
      %v2052 = vld [vmem:[%s232 + $0x60] sm:$0xf]
      %v2053 = vld [vmem:[%s232 + $0x64] sm:$0xf]
      %v2054 = vld [vmem:[%s232 + $0x68] sm:$0xf]
      %v2055 = vld [vmem:[%s232 + $0x6c] sm:$0xf]
      %v2056 = vld [vmem:[%s232 + $0x70] sm:$0xf]
      %v2057 = vld [vmem:[%s232 + $0x74] sm:$0xf]
      %v2058 = vld [vmem:[%s232 + $0x78] sm:$0xf]
      %v2059 = vld [vmem:[%s232 + $0x7c] sm:$0xf]
      %v2060 = vld [vmem:[%s232 + $0x80] sm:$0xf]
      %v2061 = vld [vmem:[%s232 + $0x84] sm:$0xf]
      %v2062 = vld [vmem:[%s232 + $0x88] sm:$0xf]
      %v2063 = vld [vmem:[%s232 + $0x8c] sm:$0xf]
      %v2064 = vld [vmem:[%s232 + $0x90] sm:$0xf]
      %v2065 = vld [vmem:[%s232 + $0x94] sm:$0xf]
      %v2066 = vld [vmem:[%s232 + $0x98] sm:$0xf]
      %v2067 = vld [vmem:[%s232 + $0x9c] sm:$0xf]
      %v2068 = vld [vmem:[%s232 + $0xa0] sm:$0x3]
      %s2069 = scalar_lea.vmem %s239, 12
      %v2070 = vld [vmem:[%s2069] sm:$0x3]
      %v2108 = vunpack.c.l.b16 %v2032
      %v2109 = vunpack.c.l.b16 %v2033
      %v2110 = vunpack.c.l.b16 %v2034
      %v2111 = vunpack.c.l.b16 %v2035
      %v2112 = vunpack.c.l.b16 %v2036
      %v2113 = vunpack.c.l.b16 %v2037
      %v2114 = vunpack.c.l.b16 %v2038
      %v2115 = vunpack.c.l.b16 %v2039
      %v2116 = vunpack.c.l.b16 %v2040
      %v2117 = vunpack.c.l.b16 %v2041
      %v2118 = vunpack.c.l.b16 %v2042
      %v2119 = vunpack.c.l.b16 %v2043
      %v2120 = vunpack.c.l.b16 %v2044
      %v2121 = vunpack.c.l.b16 %v2045
      %v2122 = vunpack.c.l.b16 %v2046
      %v2123 = vunpack.c.l.b16 %v2047
      %v2124 = vunpack.c.l.b16 %v2048
      %v2125 = vunpack.c.l.b16 %v2049
      %v2126 = vunpack.c.l.b16 %v2050
      %v2127 = vunpack.c.l.b16 %v2051
      %v2128 = vunpack.c.l.b16 %v2052
      %v2129 = vunpack.c.l.b16 %v2053
      %v2130 = vunpack.c.l.b16 %v2054
      %v2131 = vunpack.c.l.b16 %v2055
      %v2132 = vunpack.c.l.b16 %v2056
      %v2133 = vunpack.c.l.b16 %v2057
      %v2134 = vunpack.c.l.b16 %v2058
      %v2135 = vunpack.c.l.b16 %v2059
      %v2136 = vunpack.c.l.b16 %v2060
      %v2137 = vunpack.c.l.b16 %v2061
      %v2138 = vunpack.c.l.b16 %v2062
      %v2139 = vunpack.c.l.b16 %v2063
      %v2140 = vunpack.c.l.b16 %v2064
      %v2141 = vunpack.c.l.b16 %v2065
      %v2142 = vunpack.c.l.b16 %v2066
      %v2143 = vunpack.c.l.b16 %v2067
      %v2144 = vunpack.c.l.b16 %v2068
      %v2145 = vpack.c.b16 %v2109, %v2108
      %v2146 = vpack.c.b16 %v2111, %v2110
      %v2147 = vpack.c.b16 %v2113, %v2112
      %v2148 = vpack.c.b16 %v2115, %v2114
      %v2149 = vpack.c.b16 %v2117, %v2116
      %v2150 = vpack.c.b16 %v2119, %v2118
      %v2151 = vpack.c.b16 %v2121, %v2120
      %v2152 = vpack.c.b16 %v2123, %v2122
      %v2153 = vpack.c.b16 %v2125, %v2124
      %v2154 = vpack.c.b16 %v2127, %v2126
      %v2155 = vpack.c.b16 %v2129, %v2128
      %v2156 = vpack.c.b16 %v2131, %v2130
      %v2157 = vpack.c.b16 %v2133, %v2132
      %v2158 = vpack.c.b16 %v2135, %v2134
      %v2159 = vpack.c.b16 %v2137, %v2136
      %v2160 = vpack.c.b16 %v2139, %v2138
      %v2161 = vpack.c.b16 %v2141, %v2140
      %v2162 = vpack.c.b16 %v2143, %v2142
      %v2163 = vpack.c.b16 %v2144, %v2144
      %v2164 = vrot.slane %v2145, 2
      %v2165 = vrot.slane %v2146, 2
      %v2166 = vsel %vm1802, %v2164, %v2165
      %v2167 = vrot.slane %v2147, 2
      %v2168 = vsel %vm1802, %v2165, %v2167
      %v2169 = vrot.slane %v2148, 2
      %v2170 = vsel %vm1802, %v2167, %v2169
      %v2171 = vrot.slane %v2149, 2
      %v2172 = vsel %vm1802, %v2169, %v2171
      %v2173 = vrot.slane %v2150, 2
      %v2174 = vsel %vm1802, %v2171, %v2173
      %v2175 = vrot.slane %v2151, 2
      %v2176 = vsel %vm1802, %v2173, %v2175
      %v2177 = vrot.slane %v2152, 2
      %v2178 = vsel %vm1802, %v2175, %v2177
      %v2179 = vrot.slane %v2153, 2
      %v2180 = vsel %vm1802, %v2177, %v2179
      %v2181 = vrot.slane %v2154, 2
      %v2182 = vsel %vm1802, %v2179, %v2181
      %v2183 = vrot.slane %v2155, 2
      %v2184 = vsel %vm1802, %v2181, %v2183
      %v2185 = vrot.slane %v2156, 2
      %v2186 = vsel %vm1802, %v2183, %v2185
      %v2187 = vrot.slane %v2157, 2
      %v2188 = vsel %vm1802, %v2185, %v2187
      %v2189 = vrot.slane %v2158, 2
      %v2190 = vsel %vm1802, %v2187, %v2189
      %v2191 = vrot.slane %v2159, 2
      %v2192 = vsel %vm1802, %v2189, %v2191
      %v2193 = vrot.slane %v2160, 2
      %v2194 = vsel %vm1802, %v2191, %v2193
      %v2195 = vrot.slane %v2161, 2
      %v2196 = vsel %vm1802, %v2193, %v2195
      %v2197 = vrot.slane %v2162, 2
      %v2198 = vsel %vm1802, %v2195, %v2197
      %v2199 = vrot.slane %v2163, 2
      %v2200 = vsel %vm1802, %v2197, %v2199
      %v2202 = vsel %vm534, %v2166, 0
      %v2205 = vsel %vm534, %v2168, 0
      %v2208 = vsel %vm534, %v2170, 0
      %v2211 = vsel %vm534, %v2172, 0
      %v2214 = vsel %vm534, %v2174, 0
      %v2217 = vsel %vm534, %v2176, 0
      %v2220 = vsel %vm534, %v2178, 0
      %v2223 = vsel %vm534, %v2180, 0
      %v2226 = vsel %vm534, %v2182, 0
      %v2229 = vsel %vm534, %v2184, 0
      %v2232 = vsel %vm534, %v2186, 0
      %v2235 = vsel %vm534, %v2188, 0
      %v2238 = vsel %vm534, %v2190, 0
      %v2241 = vsel %vm534, %v2192, 0
      %v2244 = vsel %vm534, %v2194, 0
      %v2247 = vsel %vm534, %v2196, 0
      %v2250 = vsel %vm534, %v2198, 0
      %v2253 = vsel %vm534, %v2200, 0
      %v2256 = vsel %vm589, %v2070, 0
      %2258 = vmatpush.bf16.msra.mxu0 0
      %2259 = vmatpush.bf16.msra.mxu0 0
      %2260 = vmatpush.bf16.msra.mxu0 0
      %2261 = vmatpush.bf16.msra.mxu0 0
      %2262 = vmatpush.bf16.msra.mxu0 0
      %2263 = vmatpush.bf16.msra.mxu0 0
      %2264 = vmatpush.bf16.msra.mxu0 0
      %2265 = vmatpush.bf16.msra.mxu0 %v2256
      %2266 = vmatmul.bf16.gmra.mxu0 %v2202
      %v2267 = vpop.f32.mrf.mxu0
      %v2268 = vadd.f32 0.0, %v2267
      %v2269 = vpop.f32.mrf.mxu0
      %v2270 = vadd.f32 0.0, %v2269
      %2271 = vmatmul.bf16.gmra.mxu0 %v2205
      %v2272 = vpop.f32.mrf.mxu0
      %v2273 = vadd.f32 0.0, %v2272
      %v2274 = vpop.f32.mrf.mxu0
      %v2275 = vadd.f32 0.0, %v2274
      %2276 = vmatmul.bf16.gmra.mxu0 %v2208
      %v2277 = vpop.f32.mrf.mxu0
      %v2278 = vadd.f32 0.0, %v2277
      %v2279 = vpop.f32.mrf.mxu0
      %v2280 = vadd.f32 0.0, %v2279
      %2281 = vmatmul.bf16.gmra.mxu0 %v2211
      %v2282 = vpop.f32.mrf.mxu0
      %v2283 = vadd.f32 0.0, %v2282
      %v2284 = vpop.f32.mrf.mxu0
      %v2285 = vadd.f32 0.0, %v2284
      %2286 = vmatmul.bf16.gmra.mxu0 %v2214
      %v2287 = vpop.f32.mrf.mxu0
      %v2288 = vadd.f32 0.0, %v2287
      %v2289 = vpop.f32.mrf.mxu0
      %v2290 = vadd.f32 0.0, %v2289
      %2291 = vmatmul.bf16.gmra.mxu0 %v2217
      %v2292 = vpop.f32.mrf.mxu0
      %v2293 = vadd.f32 0.0, %v2292
      %v2294 = vpop.f32.mrf.mxu0
      %v2295 = vadd.f32 0.0, %v2294
      %2296 = vmatmul.bf16.gmra.mxu0 %v2220
      %v2297 = vpop.f32.mrf.mxu0
      %v2298 = vadd.f32 0.0, %v2297
      %v2299 = vpop.f32.mrf.mxu0
      %v2300 = vadd.f32 0.0, %v2299
      %2301 = vmatmul.bf16.gmra.mxu0 %v2223
      %v2302 = vpop.f32.mrf.mxu0
      %v2303 = vadd.f32 0.0, %v2302
      %v2304 = vpop.f32.mrf.mxu0
      %v2305 = vadd.f32 0.0, %v2304
      %2306 = vmatmul.bf16.gmra.mxu0 %v2226
      %v2307 = vpop.f32.mrf.mxu0
      %v2308 = vadd.f32 0.0, %v2307
      %v2309 = vpop.f32.mrf.mxu0
      %v2310 = vadd.f32 0.0, %v2309
      %2311 = vmatmul.bf16.gmra.mxu0 %v2229
      %v2312 = vpop.f32.mrf.mxu0
      %v2313 = vadd.f32 0.0, %v2312
      %v2314 = vpop.f32.mrf.mxu0
      %v2315 = vadd.f32 0.0, %v2314
      %2316 = vmatmul.bf16.gmra.mxu0 %v2232
      %v2317 = vpop.f32.mrf.mxu0
      %v2318 = vadd.f32 0.0, %v2317
      %v2319 = vpop.f32.mrf.mxu0
      %v2320 = vadd.f32 0.0, %v2319
      %2321 = vmatmul.bf16.gmra.mxu0 %v2235
      %v2322 = vpop.f32.mrf.mxu0
      %v2323 = vadd.f32 0.0, %v2322
      %v2324 = vpop.f32.mrf.mxu0
      %v2325 = vadd.f32 0.0, %v2324
      %2326 = vmatmul.bf16.gmra.mxu0 %v2238
      %v2327 = vpop.f32.mrf.mxu0
      %v2328 = vadd.f32 0.0, %v2327
      %v2329 = vpop.f32.mrf.mxu0
      %v2330 = vadd.f32 0.0, %v2329
      %2331 = vmatmul.bf16.gmra.mxu0 %v2241
      %v2332 = vpop.f32.mrf.mxu0
      %v2333 = vadd.f32 0.0, %v2332
      %v2334 = vpop.f32.mrf.mxu0
      %v2335 = vadd.f32 0.0, %v2334
      %2336 = vmatmul.bf16.gmra.mxu0 %v2244
      %v2337 = vpop.f32.mrf.mxu0
      %v2338 = vadd.f32 0.0, %v2337
      %v2339 = vpop.f32.mrf.mxu0
      %v2340 = vadd.f32 0.0, %v2339
      %2341 = vmatmul.bf16.gmra.mxu0 %v2247
      %v2342 = vpop.f32.mrf.mxu0
      %v2343 = vadd.f32 0.0, %v2342
      %v2344 = vpop.f32.mrf.mxu0
      %v2345 = vadd.f32 0.0, %v2344
      %2346 = vmatmul.bf16.gmra.mxu0 %v2250
      %v2347 = vpop.f32.mrf.mxu0
      %v2348 = vadd.f32 0.0, %v2347
      %v2349 = vpop.f32.mrf.mxu0
      %v2350 = vadd.f32 0.0, %v2349
      %2351 = vmatmul.bf16.gmra.mxu0 %v2253
      %v2352 = vpop.f32.mrf.mxu0
      %v2353 = vadd.f32 0.0, %v2352
      %v2354 = vpop.f32.mrf.mxu0
      %v2355 = vadd.f32 0.0, %v2354
      %2356 = vdwg.mxu0
      %v2357 = vadd.f32 %v1996, %v2268
      %v2358 = vadd.f32 %v1997, %v2270
      %v2359 = vadd.f32 %v1998, %v2273
      %v2360 = vadd.f32 %v1999, %v2275
      %v2361 = vadd.f32 %v2000, %v2278
      %v2362 = vadd.f32 %v2001, %v2280
      %v2363 = vadd.f32 %v2002, %v2283
      %v2364 = vadd.f32 %v2003, %v2285
      %v2365 = vadd.f32 %v2004, %v2288
      %v2366 = vadd.f32 %v2005, %v2290
      %v2367 = vadd.f32 %v2006, %v2293
      %v2368 = vadd.f32 %v2007, %v2295
      %v2369 = vadd.f32 %v2008, %v2298
      %v2370 = vadd.f32 %v2009, %v2300
      %v2371 = vadd.f32 %v2010, %v2303
      %v2372 = vadd.f32 %v2011, %v2305
      %v2373 = vadd.f32 %v2012, %v2308
      %v2374 = vadd.f32 %v2013, %v2310
      %v2375 = vadd.f32 %v2014, %v2313
      %v2376 = vadd.f32 %v2015, %v2315
      %v2377 = vadd.f32 %v2016, %v2318
      %v2378 = vadd.f32 %v2017, %v2320
      %v2379 = vadd.f32 %v2018, %v2323
      %v2380 = vadd.f32 %v2019, %v2325
      %v2381 = vadd.f32 %v2020, %v2328
      %v2382 = vadd.f32 %v2021, %v2330
      %v2383 = vadd.f32 %v2022, %v2333
      %v2384 = vadd.f32 %v2023, %v2335
      %v2385 = vadd.f32 %v2024, %v2338
      %v2386 = vadd.f32 %v2025, %v2340
      %v2387 = vadd.f32 %v2026, %v2343
      %v2388 = vadd.f32 %v2027, %v2345
      %v2389 = vadd.f32 %v2028, %v2348
      %v2390 = vadd.f32 %v2029, %v2350
      %v2391 = vadd.f32 %v2030, %v2353
      %v2392 = vadd.f32 %v2031, %v2355
      %v2393 = vld [vmem:[%s232 + $0xa0] sm:$0x7]
      %s2394 = scalar_lea.vmem %s239, 14
      %v2395 = vld [vmem:[%s2394] sm:$0x3]
      %v2397 = vunpack.c.l.b16 %v2393
      %v2398 = vpack.c.b16 %v2397, %v2397
      %vm2399 = vsmask.f32 5376
      %v2401 = vshrl.u32 %v2145, 16
      %v2403 = vrot.slane %v2401, 2
      %v2404 = vshll.u32 %v2145, 16
      %v2406 = vrot.slane %v2404, 3
      %v2407 = vor.u32 %v2403, %v2406
      %v2409 = vshrl.u32 %v2146, 16
      %v2411 = vrot.slane %v2409, 2
      %v2412 = vshll.u32 %v2146, 16
      %v2414 = vrot.slane %v2412, 3
      %v2415 = vor.u32 %v2411, %v2414
      %v2416 = vsel %vm2399, %v2407, %v2415
      %v2418 = vshrl.u32 %v2147, 16
      %v2420 = vrot.slane %v2418, 2
      %v2421 = vshll.u32 %v2147, 16
      %v2423 = vrot.slane %v2421, 3
      %v2424 = vor.u32 %v2420, %v2423
      %v2425 = vsel %vm2399, %v2415, %v2424
      %v2427 = vshrl.u32 %v2148, 16
      %v2429 = vrot.slane %v2427, 2
      %v2430 = vshll.u32 %v2148, 16
      %v2432 = vrot.slane %v2430, 3
      %v2433 = vor.u32 %v2429, %v2432
      %v2434 = vsel %vm2399, %v2424, %v2433
      %v2436 = vshrl.u32 %v2149, 16
      %v2438 = vrot.slane %v2436, 2
      %v2439 = vshll.u32 %v2149, 16
      %v2441 = vrot.slane %v2439, 3
      %v2442 = vor.u32 %v2438, %v2441
      %v2443 = vsel %vm2399, %v2433, %v2442
      %v2445 = vshrl.u32 %v2150, 16
      %v2447 = vrot.slane %v2445, 2
      %v2448 = vshll.u32 %v2150, 16
      %v2450 = vrot.slane %v2448, 3
      %v2451 = vor.u32 %v2447, %v2450
      %v2452 = vsel %vm2399, %v2442, %v2451
      %v2454 = vshrl.u32 %v2151, 16
      %v2456 = vrot.slane %v2454, 2
      %v2457 = vshll.u32 %v2151, 16
      %v2459 = vrot.slane %v2457, 3
      %v2460 = vor.u32 %v2456, %v2459
      %v2461 = vsel %vm2399, %v2451, %v2460
      %v2463 = vshrl.u32 %v2152, 16
      %v2465 = vrot.slane %v2463, 2
      %v2466 = vshll.u32 %v2152, 16
      %v2468 = vrot.slane %v2466, 3
      %v2469 = vor.u32 %v2465, %v2468
      %v2470 = vsel %vm2399, %v2460, %v2469
      %v2472 = vshrl.u32 %v2153, 16
      %v2474 = vrot.slane %v2472, 2
      %v2475 = vshll.u32 %v2153, 16
      %v2477 = vrot.slane %v2475, 3
      %v2478 = vor.u32 %v2474, %v2477
      %v2479 = vsel %vm2399, %v2469, %v2478
      %v2481 = vshrl.u32 %v2154, 16
      %v2483 = vrot.slane %v2481, 2
      %v2484 = vshll.u32 %v2154, 16
      %v2486 = vrot.slane %v2484, 3
      %v2487 = vor.u32 %v2483, %v2486
      %v2488 = vsel %vm2399, %v2478, %v2487
      %v2490 = vshrl.u32 %v2155, 16
      %v2492 = vrot.slane %v2490, 2
      %v2493 = vshll.u32 %v2155, 16
      %v2495 = vrot.slane %v2493, 3
      %v2496 = vor.u32 %v2492, %v2495
      %v2497 = vsel %vm2399, %v2487, %v2496
      %v2499 = vshrl.u32 %v2156, 16
      %v2501 = vrot.slane %v2499, 2
      %v2502 = vshll.u32 %v2156, 16
      %v2504 = vrot.slane %v2502, 3
      %v2505 = vor.u32 %v2501, %v2504
      %v2506 = vsel %vm2399, %v2496, %v2505
      %v2508 = vshrl.u32 %v2157, 16
      %v2510 = vrot.slane %v2508, 2
      %v2511 = vshll.u32 %v2157, 16
      %v2513 = vrot.slane %v2511, 3
      %v2514 = vor.u32 %v2510, %v2513
      %v2515 = vsel %vm2399, %v2505, %v2514
      %v2517 = vshrl.u32 %v2158, 16
      %v2519 = vrot.slane %v2517, 2
      %v2520 = vshll.u32 %v2158, 16
      %v2522 = vrot.slane %v2520, 3
      %v2523 = vor.u32 %v2519, %v2522
      %v2524 = vsel %vm2399, %v2514, %v2523
      %v2526 = vshrl.u32 %v2159, 16
      %v2528 = vrot.slane %v2526, 2
      %v2529 = vshll.u32 %v2159, 16
      %v2531 = vrot.slane %v2529, 3
      %v2532 = vor.u32 %v2528, %v2531
      %v2533 = vsel %vm2399, %v2523, %v2532
      %v2535 = vshrl.u32 %v2160, 16
      %v2537 = vrot.slane %v2535, 2
      %v2538 = vshll.u32 %v2160, 16
      %v2540 = vrot.slane %v2538, 3
      %v2541 = vor.u32 %v2537, %v2540
      %v2542 = vsel %vm2399, %v2532, %v2541
      %v2544 = vshrl.u32 %v2161, 16
      %v2546 = vrot.slane %v2544, 2
      %v2547 = vshll.u32 %v2161, 16
      %v2549 = vrot.slane %v2547, 3
      %v2550 = vor.u32 %v2546, %v2549
      %v2551 = vsel %vm2399, %v2541, %v2550
      %v2553 = vshrl.u32 %v2162, 16
      %v2555 = vrot.slane %v2553, 2
      %v2556 = vshll.u32 %v2162, 16
      %v2558 = vrot.slane %v2556, 3
      %v2559 = vor.u32 %v2555, %v2558
      %v2560 = vsel %vm2399, %v2550, %v2559
      %v2562 = vshrl.u32 %v2398, 16
      %v2564 = vrot.slane %v2562, 2
      %v2565 = vshll.u32 %v2398, 16
      %v2567 = vrot.slane %v2565, 3
      %v2568 = vor.u32 %v2564, %v2567
      %v2569 = vsel %vm2399, %v2559, %v2568
      %v2571 = vsel %vm534, %v2416, 0
      %v2574 = vsel %vm534, %v2425, 0
      %v2577 = vsel %vm534, %v2434, 0
      %v2580 = vsel %vm534, %v2443, 0
      %v2583 = vsel %vm534, %v2452, 0
      %v2586 = vsel %vm534, %v2461, 0
      %v2589 = vsel %vm534, %v2470, 0
      %v2592 = vsel %vm534, %v2479, 0
      %v2595 = vsel %vm534, %v2488, 0
      %v2598 = vsel %vm534, %v2497, 0
      %v2601 = vsel %vm534, %v2506, 0
      %v2604 = vsel %vm534, %v2515, 0
      %v2607 = vsel %vm534, %v2524, 0
      %v2610 = vsel %vm534, %v2533, 0
      %v2613 = vsel %vm534, %v2542, 0
      %v2616 = vsel %vm534, %v2551, 0
      %v2619 = vsel %vm534, %v2560, 0
      %v2622 = vsel %vm534, %v2569, 0
      %v2625 = vsel %vm589, %v2395, 0
      %2627 = vmatpush.bf16.msra.mxu0 0
      %2628 = vmatpush.bf16.msra.mxu0 0
      %2629 = vmatpush.bf16.msra.mxu0 0
      %2630 = vmatpush.bf16.msra.mxu0 0
      %2631 = vmatpush.bf16.msra.mxu0 0
      %2632 = vmatpush.bf16.msra.mxu0 0
      %2633 = vmatpush.bf16.msra.mxu0 0
      %2634 = vmatpush.bf16.msra.mxu0 %v2625
      %2635 = vmatmul.bf16.gmra.mxu0 %v2571
      %v2636 = vpop.f32.mrf.mxu0
      %v2637 = vadd.f32 0.0, %v2636
      %v2638 = vpop.f32.mrf.mxu0
      %v2639 = vadd.f32 0.0, %v2638
      %2640 = vmatmul.bf16.gmra.mxu0 %v2574
      %v2641 = vpop.f32.mrf.mxu0
      %v2642 = vadd.f32 0.0, %v2641
      %v2643 = vpop.f32.mrf.mxu0
      %v2644 = vadd.f32 0.0, %v2643
      %2645 = vmatmul.bf16.gmra.mxu0 %v2577
      %v2646 = vpop.f32.mrf.mxu0
      %v2647 = vadd.f32 0.0, %v2646
      %v2648 = vpop.f32.mrf.mxu0
      %v2649 = vadd.f32 0.0, %v2648
      %2650 = vmatmul.bf16.gmra.mxu0 %v2580
      %v2651 = vpop.f32.mrf.mxu0
      %v2652 = vadd.f32 0.0, %v2651
      %v2653 = vpop.f32.mrf.mxu0
      %v2654 = vadd.f32 0.0, %v2653
      %2655 = vmatmul.bf16.gmra.mxu0 %v2583
      %v2656 = vpop.f32.mrf.mxu0
      %v2657 = vadd.f32 0.0, %v2656
      %v2658 = vpop.f32.mrf.mxu0
      %v2659 = vadd.f32 0.0, %v2658
      %2660 = vmatmul.bf16.gmra.mxu0 %v2586
      %v2661 = vpop.f32.mrf.mxu0
      %v2662 = vadd.f32 0.0, %v2661
      %v2663 = vpop.f32.mrf.mxu0
      %v2664 = vadd.f32 0.0, %v2663
      %2665 = vmatmul.bf16.gmra.mxu0 %v2589
      %v2666 = vpop.f32.mrf.mxu0
      %v2667 = vadd.f32 0.0, %v2666
      %v2668 = vpop.f32.mrf.mxu0
      %v2669 = vadd.f32 0.0, %v2668
      %2670 = vmatmul.bf16.gmra.mxu0 %v2592
      %v2671 = vpop.f32.mrf.mxu0
      %v2672 = vadd.f32 0.0, %v2671
      %v2673 = vpop.f32.mrf.mxu0
      %v2674 = vadd.f32 0.0, %v2673
      %2675 = vmatmul.bf16.gmra.mxu0 %v2595
      %v2676 = vpop.f32.mrf.mxu0
      %v2677 = vadd.f32 0.0, %v2676
      %v2678 = vpop.f32.mrf.mxu0
      %v2679 = vadd.f32 0.0, %v2678
      %2680 = vmatmul.bf16.gmra.mxu0 %v2598
      %v2681 = vpop.f32.mrf.mxu0
      %v2682 = vadd.f32 0.0, %v2681
      %v2683 = vpop.f32.mrf.mxu0
      %v2684 = vadd.f32 0.0, %v2683
      %2685 = vmatmul.bf16.gmra.mxu0 %v2601
      %v2686 = vpop.f32.mrf.mxu0
      %v2687 = vadd.f32 0.0, %v2686
      %v2688 = vpop.f32.mrf.mxu0
      %v2689 = vadd.f32 0.0, %v2688
      %2690 = vmatmul.bf16.gmra.mxu0 %v2604
      %v2691 = vpop.f32.mrf.mxu0
      %v2692 = vadd.f32 0.0, %v2691
      %v2693 = vpop.f32.mrf.mxu0
      %v2694 = vadd.f32 0.0, %v2693
      %2695 = vmatmul.bf16.gmra.mxu0 %v2607
      %v2696 = vpop.f32.mrf.mxu0
      %v2697 = vadd.f32 0.0, %v2696
      %v2698 = vpop.f32.mrf.mxu0
      %v2699 = vadd.f32 0.0, %v2698
      %2700 = vmatmul.bf16.gmra.mxu0 %v2610
      %v2701 = vpop.f32.mrf.mxu0
      %v2702 = vadd.f32 0.0, %v2701
      %v2703 = vpop.f32.mrf.mxu0
      %v2704 = vadd.f32 0.0, %v2703
      %2705 = vmatmul.bf16.gmra.mxu0 %v2613
      %v2706 = vpop.f32.mrf.mxu0
      %v2707 = vadd.f32 0.0, %v2706
      %v2708 = vpop.f32.mrf.mxu0
      %v2709 = vadd.f32 0.0, %v2708
      %2710 = vmatmul.bf16.gmra.mxu0 %v2616
      %v2711 = vpop.f32.mrf.mxu0
      %v2712 = vadd.f32 0.0, %v2711
      %v2713 = vpop.f32.mrf.mxu0
      %v2714 = vadd.f32 0.0, %v2713
      %2715 = vmatmul.bf16.gmra.mxu0 %v2619
      %v2716 = vpop.f32.mrf.mxu0
      %v2717 = vadd.f32 0.0, %v2716
      %v2718 = vpop.f32.mrf.mxu0
      %v2719 = vadd.f32 0.0, %v2718
      %2720 = vmatmul.bf16.gmra.mxu0 %v2622
      %v2721 = vpop.f32.mrf.mxu0
      %v2722 = vadd.f32 0.0, %v2721
      %v2723 = vpop.f32.mrf.mxu0
      %v2724 = vadd.f32 0.0, %v2723
      %2725 = vdwg.mxu0
      %v2726 = vadd.f32 %v2357, %v2637
      %v2727 = vadd.f32 %v2358, %v2639
      %v2728 = vadd.f32 %v2359, %v2642
      %v2729 = vadd.f32 %v2360, %v2644
      %v2730 = vadd.f32 %v2361, %v2647
      %v2731 = vadd.f32 %v2362, %v2649
      %v2732 = vadd.f32 %v2363, %v2652
      %v2733 = vadd.f32 %v2364, %v2654
      %v2734 = vadd.f32 %v2365, %v2657
      %v2735 = vadd.f32 %v2366, %v2659
      %v2736 = vadd.f32 %v2367, %v2662
      %v2737 = vadd.f32 %v2368, %v2664
      %v2738 = vadd.f32 %v2369, %v2667
      %v2739 = vadd.f32 %v2370, %v2669
      %v2740 = vadd.f32 %v2371, %v2672
      %v2741 = vadd.f32 %v2372, %v2674
      %v2742 = vadd.f32 %v2373, %v2677
      %v2743 = vadd.f32 %v2374, %v2679
      %v2744 = vadd.f32 %v2375, %v2682
      %v2745 = vadd.f32 %v2376, %v2684
      %v2746 = vadd.f32 %v2377, %v2687
      %v2747 = vadd.f32 %v2378, %v2689
      %v2748 = vadd.f32 %v2379, %v2692
      %v2749 = vadd.f32 %v2380, %v2694
      %v2750 = vadd.f32 %v2381, %v2697
      %v2751 = vadd.f32 %v2382, %v2699
      %v2752 = vadd.f32 %v2383, %v2702
      %v2753 = vadd.f32 %v2384, %v2704
      %v2754 = vadd.f32 %v2385, %v2707
      %v2755 = vadd.f32 %v2386, %v2709
      %v2756 = vadd.f32 %v2387, %v2712
      %v2757 = vadd.f32 %v2388, %v2714
      %v2758 = vadd.f32 %v2389, %v2717
      %v2759 = vadd.f32 %v2390, %v2719
      %v2760 = vadd.f32 %v2391, %v2722
      %v2761 = vadd.f32 %v2392, %v2724
      %v2762 = vld [vmem:[%s232 + $0x10] sm:$0x8]
      %s2763 = scalar_lea.vmem %s239, 16
      %v2764 = vld [vmem:[%s2763] sm:$0x3]
      %v2766 = vunpack.c.l.b16 %v2762
      %v2767 = vpack.c.b16 %v2109, %v2766
      %vm2768 = vcmask 1044480
      %v2769 = vrot.slane %v2767, 3
      %v2770 = vrot.slane %v2146, 3
      %v2771 = vsel %vm2768, %v2769, %v2770
      %v2772 = vrot.slane %v2147, 3
      %v2773 = vsel %vm2768, %v2770, %v2772
      %v2774 = vrot.slane %v2148, 3
      %v2775 = vsel %vm2768, %v2772, %v2774
      %v2776 = vrot.slane %v2149, 3
      %v2777 = vsel %vm2768, %v2774, %v2776
      %v2778 = vrot.slane %v2150, 3
      %v2779 = vsel %vm2768, %v2776, %v2778
      %v2780 = vrot.slane %v2151, 3
      %v2781 = vsel %vm2768, %v2778, %v2780
      %v2782 = vrot.slane %v2152, 3
      %v2783 = vsel %vm2768, %v2780, %v2782
      %v2784 = vrot.slane %v2153, 3
      %v2785 = vsel %vm2768, %v2782, %v2784
      %v2786 = vrot.slane %v2154, 3
      %v2787 = vsel %vm2768, %v2784, %v2786
      %v2788 = vrot.slane %v2155, 3
      %v2789 = vsel %vm2768, %v2786, %v2788
      %v2790 = vrot.slane %v2156, 3
      %v2791 = vsel %vm2768, %v2788, %v2790
      %v2792 = vrot.slane %v2157, 3
      %v2793 = vsel %vm2768, %v2790, %v2792
      %v2794 = vrot.slane %v2158, 3
      %v2795 = vsel %vm2768, %v2792, %v2794
      %v2796 = vrot.slane %v2159, 3
      %v2797 = vsel %vm2768, %v2794, %v2796
      %v2798 = vrot.slane %v2160, 3
      %v2799 = vsel %vm2768, %v2796, %v2798
      %v2800 = vrot.slane %v2161, 3
      %v2801 = vsel %vm2768, %v2798, %v2800
      %v2802 = vrot.slane %v2162, 3
      %v2803 = vsel %vm2768, %v2800, %v2802
      %v2804 = vrot.slane %v2398, 3
      %v2805 = vsel %vm2768, %v2802, %v2804
      %v2807 = vsel %vm534, %v2771, 0
      %v2810 = vsel %vm534, %v2773, 0
      %v2813 = vsel %vm534, %v2775, 0
      %v2816 = vsel %vm534, %v2777, 0
      %v2819 = vsel %vm534, %v2779, 0
      %v2822 = vsel %vm534, %v2781, 0
      %v2825 = vsel %vm534, %v2783, 0
      %v2828 = vsel %vm534, %v2785, 0
      %v2831 = vsel %vm534, %v2787, 0
      %v2834 = vsel %vm534, %v2789, 0
      %v2837 = vsel %vm534, %v2791, 0
      %v2840 = vsel %vm534, %v2793, 0
      %v2843 = vsel %vm534, %v2795, 0
      %v2846 = vsel %vm534, %v2797, 0
      %v2849 = vsel %vm534, %v2799, 0
      %v2852 = vsel %vm534, %v2801, 0
      %v2855 = vsel %vm534, %v2803, 0
      %v2858 = vsel %vm534, %v2805, 0
      %v2861 = vsel %vm589, %v2764, 0
      %2863 = vmatpush.bf16.msra.mxu0 0
      %2864 = vmatpush.bf16.msra.mxu0 0
      %2865 = vmatpush.bf16.msra.mxu0 0
      %2866 = vmatpush.bf16.msra.mxu0 0
      %2867 = vmatpush.bf16.msra.mxu0 0
      %2868 = vmatpush.bf16.msra.mxu0 0
      %2869 = vmatpush.bf16.msra.mxu0 0
      %2870 = vmatpush.bf16.msra.mxu0 %v2861
      %2871 = vmatmul.bf16.gmra.mxu0 %v2807
      %v2872 = vpop.f32.mrf.mxu0
      %v2873 = vadd.f32 0.0, %v2872
      %v2874 = vpop.f32.mrf.mxu0
      %v2875 = vadd.f32 0.0, %v2874
      %2876 = vmatmul.bf16.gmra.mxu0 %v2810
      %v2877 = vpop.f32.mrf.mxu0
      %v2878 = vadd.f32 0.0, %v2877
      %v2879 = vpop.f32.mrf.mxu0
      %v2880 = vadd.f32 0.0, %v2879
      %2881 = vmatmul.bf16.gmra.mxu0 %v2813
      %v2882 = vpop.f32.mrf.mxu0
      %v2883 = vadd.f32 0.0, %v2882
      %v2884 = vpop.f32.mrf.mxu0
      %v2885 = vadd.f32 0.0, %v2884
      %2886 = vmatmul.bf16.gmra.mxu0 %v2816
      %v2887 = vpop.f32.mrf.mxu0
      %v2888 = vadd.f32 0.0, %v2887
      %v2889 = vpop.f32.mrf.mxu0
      %v2890 = vadd.f32 0.0, %v2889
      %2891 = vmatmul.bf16.gmra.mxu0 %v2819
      %v2892 = vpop.f32.mrf.mxu0
      %v2893 = vadd.f32 0.0, %v2892
      %v2894 = vpop.f32.mrf.mxu0
      %v2895 = vadd.f32 0.0, %v2894
      %2896 = vmatmul.bf16.gmra.mxu0 %v2822
      %v2897 = vpop.f32.mrf.mxu0
      %v2898 = vadd.f32 0.0, %v2897
      %v2899 = vpop.f32.mrf.mxu0
      %v2900 = vadd.f32 0.0, %v2899
      %2901 = vmatmul.bf16.gmra.mxu0 %v2825
      %v2902 = vpop.f32.mrf.mxu0
      %v2903 = vadd.f32 0.0, %v2902
      %v2904 = vpop.f32.mrf.mxu0
      %v2905 = vadd.f32 0.0, %v2904
      %2906 = vmatmul.bf16.gmra.mxu0 %v2828
      %v2907 = vpop.f32.mrf.mxu0
      %v2908 = vadd.f32 0.0, %v2907
      %v2909 = vpop.f32.mrf.mxu0
      %v2910 = vadd.f32 0.0, %v2909
      %2911 = vmatmul.bf16.gmra.mxu0 %v2831
      %v2912 = vpop.f32.mrf.mxu0
      %v2913 = vadd.f32 0.0, %v2912
      %v2914 = vpop.f32.mrf.mxu0
      %v2915 = vadd.f32 0.0, %v2914
      %2916 = vmatmul.bf16.gmra.mxu0 %v2834
      %v2917 = vpop.f32.mrf.mxu0
      %v2918 = vadd.f32 0.0, %v2917
      %v2919 = vpop.f32.mrf.mxu0
      %v2920 = vadd.f32 0.0, %v2919
      %2921 = vmatmul.bf16.gmra.mxu0 %v2837
      %v2922 = vpop.f32.mrf.mxu0
      %v2923 = vadd.f32 0.0, %v2922
      %v2924 = vpop.f32.mrf.mxu0
      %v2925 = vadd.f32 0.0, %v2924
      %2926 = vmatmul.bf16.gmra.mxu0 %v2840
      %v2927 = vpop.f32.mrf.mxu0
      %v2928 = vadd.f32 0.0, %v2927
      %v2929 = vpop.f32.mrf.mxu0
      %v2930 = vadd.f32 0.0, %v2929
      %2931 = vmatmul.bf16.gmra.mxu0 %v2843
      %v2932 = vpop.f32.mrf.mxu0
      %v2933 = vadd.f32 0.0, %v2932
      %v2934 = vpop.f32.mrf.mxu0
      %v2935 = vadd.f32 0.0, %v2934
      %2936 = vmatmul.bf16.gmra.mxu0 %v2846
      %v2937 = vpop.f32.mrf.mxu0
      %v2938 = vadd.f32 0.0, %v2937
      %v2939 = vpop.f32.mrf.mxu0
      %v2940 = vadd.f32 0.0, %v2939
      %2941 = vmatmul.bf16.gmra.mxu0 %v2849
      %v2942 = vpop.f32.mrf.mxu0
      %v2943 = vadd.f32 0.0, %v2942
      %v2944 = vpop.f32.mrf.mxu0
      %v2945 = vadd.f32 0.0, %v2944
      %2946 = vmatmul.bf16.gmra.mxu0 %v2852
      %v2947 = vpop.f32.mrf.mxu0
      %v2948 = vadd.f32 0.0, %v2947
      %v2949 = vpop.f32.mrf.mxu0
      %v2950 = vadd.f32 0.0, %v2949
      %2951 = vmatmul.bf16.gmra.mxu0 %v2855
      %v2952 = vpop.f32.mrf.mxu0
      %v2953 = vadd.f32 0.0, %v2952
      %v2954 = vpop.f32.mrf.mxu0
      %v2955 = vadd.f32 0.0, %v2954
      %2956 = vmatmul.bf16.gmra.mxu0 %v2858
      %v2957 = vpop.f32.mrf.mxu0
      %v2958 = vadd.f32 0.0, %v2957
      %v2959 = vpop.f32.mrf.mxu0
      %v2960 = vadd.f32 0.0, %v2959
      %2961 = vdwg.mxu0
      %v2962 = vadd.f32 %v2726, %v2873
      %v2963 = vadd.f32 %v2727, %v2875
      %v2964 = vadd.f32 %v2728, %v2878
      %v2965 = vadd.f32 %v2729, %v2880
      %v2966 = vadd.f32 %v2730, %v2883
      %v2967 = vadd.f32 %v2731, %v2885
      %v2968 = vadd.f32 %v2732, %v2888
      %v2969 = vadd.f32 %v2733, %v2890
      %v2970 = vadd.f32 %v2734, %v2893
      %v2971 = vadd.f32 %v2735, %v2895
      %v2972 = vadd.f32 %v2736, %v2898
      %v2973 = vadd.f32 %v2737, %v2900
      %v2974 = vadd.f32 %v2738, %v2903
      %v2975 = vadd.f32 %v2739, %v2905
      %v2976 = vadd.f32 %v2740, %v2908
      %v2977 = vadd.f32 %v2741, %v2910
      %v2978 = vadd.f32 %v2742, %v2913
      %v2979 = vadd.f32 %v2743, %v2915
      %v2980 = vadd.f32 %v2744, %v2918
      %v2981 = vadd.f32 %v2745, %v2920
      %v2982 = vadd.f32 %v2746, %v2923
      %v2983 = vadd.f32 %v2747, %v2925
      %v2984 = vadd.f32 %v2748, %v2928
      %v2985 = vadd.f32 %v2749, %v2930
      %v2986 = vadd.f32 %v2750, %v2933
      %v2987 = vadd.f32 %v2751, %v2935
      %v2988 = vadd.f32 %v2752, %v2938
      %v2989 = vadd.f32 %v2753, %v2940
      %v2990 = vadd.f32 %v2754, %v2943
      %v2991 = vadd.f32 %v2755, %v2945
      %v2992 = vadd.f32 %v2756, %v2948
      %v2993 = vadd.f32 %v2757, %v2950
      %v2994 = vadd.f32 %v2758, %v2953
      %v2995 = vadd.f32 %v2759, %v2955
      %v2996 = vadd.f32 %v2760, %v2958
      %v2997 = vadd.f32 %v2761, %v2960
      %p2998 = scmp.eq.s32.totalorder %s21, 0
      // Predicated region
      $region33: #{conv_bn_relu.1} parent=31 // pred_check
        %p2999 = pneg %p2998
      $region34: #{conv_bn_relu.1} parent=31 // pred_check_branch
        %3001 = sbr.rel (%p2999) target = $region36
      $region35: #{conv_bn_relu.1} parent=31 // pred_region
        %3002 = vst [vmem:[#allocation2] sm:$0xff] %v2962
        %3003 = vst [vmem:[#allocation2 + $0x8] sm:$0xff] %v2963
        %3004 = vst [vmem:[#allocation2 + $0x10] sm:$0xff] %v2964
        %3005 = vst [vmem:[#allocation2 + $0x18] sm:$0xff] %v2965
        %3006 = vst [vmem:[#allocation2 + $0x20] sm:$0xff] %v2966
        %3007 = vst [vmem:[#allocation2 + $0x28] sm:$0xff] %v2967
        %3008 = vst [vmem:[#allocation2 + $0x30] sm:$0xff] %v2968
        %3009 = vst [vmem:[#allocation2 + $0x38] sm:$0xff] %v2969
        %3010 = vst [vmem:[#allocation2 + $0x40] sm:$0xff] %v2970
        %3011 = vst [vmem:[#allocation2 + $0x48] sm:$0xff] %v2971
        %3012 = vst [vmem:[#allocation2 + $0x50] sm:$0xff] %v2972
        %3013 = vst [vmem:[#allocation2 + $0x58] sm:$0xff] %v2973
        %3014 = vst [vmem:[#allocation2 + $0x60] sm:$0xff] %v2974
        %3015 = vst [vmem:[#allocation2 + $0x68] sm:$0xff] %v2975
        %3016 = vst [vmem:[#allocation2 + $0x70] sm:$0xff] %v2976
        %3017 = vst [vmem:[#allocation2 + $0x78] sm:$0xff] %v2977
        %3018 = vst [vmem:[#allocation2 + $0x80] sm:$0xff] %v2978
        %3019 = vst [vmem:[#allocation2 + $0x88] sm:$0xff] %v2979
        %3020 = vst [vmem:[#allocation2 + $0x90] sm:$0xff] %v2980
        %3021 = vst [vmem:[#allocation2 + $0x98] sm:$0xff] %v2981
        %3022 = vst [vmem:[#allocation2 + $0xa0] sm:$0xff] %v2982
        %3023 = vst [vmem:[#allocation2 + $0xa8] sm:$0xff] %v2983
        %3024 = vst [vmem:[#allocation2 + $0xb0] sm:$0xff] %v2984
        %3025 = vst [vmem:[#allocation2 + $0xb8] sm:$0xff] %v2985
        %3026 = vst [vmem:[#allocation2 + $0xc0] sm:$0xff] %v2986
        %3027 = vst [vmem:[#allocation2 + $0xc8] sm:$0xff] %v2987
        %3028 = vst [vmem:[#allocation2 + $0xd0] sm:$0xff] %v2988
        %3029 = vst [vmem:[#allocation2 + $0xd8] sm:$0xff] %v2989
        %3030 = vst [vmem:[#allocation2 + $0xe0] sm:$0xff] %v2990
        %3031 = vst [vmem:[#allocation2 + $0xe8] sm:$0xff] %v2991
        %3032 = vst [vmem:[#allocation2 + $0xf0] sm:$0xff] %v2992
        %3033 = vst [vmem:[#allocation2 + $0xf8] sm:$0xff] %v2993
        %3034 = vst [vmem:[#allocation2 + $0x100] sm:$0xff] %v2994
        %3035 = vst [vmem:[#allocation2 + $0x108] sm:$0xff] %v2995
        %3036 = vst [vmem:[#allocation2 + $0x110] sm:$0xff] %v2996
        %3037 = vst [vmem:[#allocation2 + $0x118] sm:$0xff] %v2997
      $region36: #{conv_bn_relu.1} parent=31 // pred_fallthru
        _
      %p3038 = scmp.gt.s32.totalorder %s21, 0
      // Predicated region
      $region37: #{conv_bn_relu.1} parent=31 // pred_check
        %p3039 = pneg %p3038
      $region38: #{conv_bn_relu.1} parent=31 // pred_check_branch
        %3041 = sbr.rel (%p3039) target = $region40
      $region39: #{conv_bn_relu.1} parent=31 // pred_region
        %v3042 = vld [vmem:[#allocation2] sm:$0xff]
        %v3043 = vld [vmem:[#allocation2 + $0x8] sm:$0xff]
        %v3044 = vld [vmem:[#allocation2 + $0x10] sm:$0xff]
        %v3045 = vld [vmem:[#allocation2 + $0x18] sm:$0xff]
        %v3046 = vld [vmem:[#allocation2 + $0x20] sm:$0xff]
        %v3047 = vld [vmem:[#allocation2 + $0x28] sm:$0xff]
        %v3048 = vld [vmem:[#allocation2 + $0x30] sm:$0xff]
        %v3049 = vld [vmem:[#allocation2 + $0x38] sm:$0xff]
        %v3050 = vld [vmem:[#allocation2 + $0x40] sm:$0xff]
        %v3051 = vld [vmem:[#allocation2 + $0x48] sm:$0xff]
        %v3052 = vld [vmem:[#allocation2 + $0x50] sm:$0xff]
        %v3053 = vld [vmem:[#allocation2 + $0x58] sm:$0xff]
        %v3054 = vld [vmem:[#allocation2 + $0x60] sm:$0xff]
        %v3055 = vld [vmem:[#allocation2 + $0x68] sm:$0xff]
        %v3056 = vld [vmem:[#allocation2 + $0x70] sm:$0xff]
        %v3057 = vld [vmem:[#allocation2 + $0x78] sm:$0xff]
        %v3058 = vld [vmem:[#allocation2 + $0x80] sm:$0xff]
        %v3059 = vld [vmem:[#allocation2 + $0x88] sm:$0xff]
        %v3060 = vld [vmem:[#allocation2 + $0x90] sm:$0xff]
        %v3061 = vld [vmem:[#allocation2 + $0x98] sm:$0xff]
        %v3062 = vld [vmem:[#allocation2 + $0xa0] sm:$0xff]
        %v3063 = vld [vmem:[#allocation2 + $0xa8] sm:$0xff]
        %v3064 = vld [vmem:[#allocation2 + $0xb0] sm:$0xff]
        %v3065 = vld [vmem:[#allocation2 + $0xb8] sm:$0xff]
        %v3066 = vld [vmem:[#allocation2 + $0xc0] sm:$0xff]
        %v3067 = vld [vmem:[#allocation2 + $0xc8] sm:$0xff]
        %v3068 = vld [vmem:[#allocation2 + $0xd0] sm:$0xff]
        %v3069 = vld [vmem:[#allocation2 + $0xd8] sm:$0xff]
        %v3070 = vld [vmem:[#allocation2 + $0xe0] sm:$0xff]
        %v3071 = vld [vmem:[#allocation2 + $0xe8] sm:$0xff]
        %v3072 = vld [vmem:[#allocation2 + $0xf0] sm:$0xff]
        %v3073 = vld [vmem:[#allocation2 + $0xf8] sm:$0xff]
        %v3074 = vld [vmem:[#allocation2 + $0x100] sm:$0xff]
        %v3075 = vld [vmem:[#allocation2 + $0x108] sm:$0xff]
        %v3076 = vld [vmem:[#allocation2 + $0x110] sm:$0xff]
        %v3077 = vld [vmem:[#allocation2 + $0x118] sm:$0xff]
        %v3078 = vadd.f32 %v3042, %v2962
        %v3079 = vadd.f32 %v3043, %v2963
        %v3080 = vadd.f32 %v3044, %v2964
        %v3081 = vadd.f32 %v3045, %v2965
        %v3082 = vadd.f32 %v3046, %v2966
        %v3083 = vadd.f32 %v3047, %v2967
        %v3084 = vadd.f32 %v3048, %v2968
        %v3085 = vadd.f32 %v3049, %v2969
        %v3086 = vadd.f32 %v3050, %v2970
        %v3087 = vadd.f32 %v3051, %v2971
        %v3088 = vadd.f32 %v3052, %v2972
        %v3089 = vadd.f32 %v3053, %v2973
        %v3090 = vadd.f32 %v3054, %v2974
        %v3091 = vadd.f32 %v3055, %v2975
        %v3092 = vadd.f32 %v3056, %v2976
        %v3093 = vadd.f32 %v3057, %v2977
        %v3094 = vadd.f32 %v3058, %v2978
        %v3095 = vadd.f32 %v3059, %v2979
        %v3096 = vadd.f32 %v3060, %v2980
        %v3097 = vadd.f32 %v3061, %v2981
        %v3098 = vadd.f32 %v3062, %v2982
        %v3099 = vadd.f32 %v3063, %v2983
        %v3100 = vadd.f32 %v3064, %v2984
        %v3101 = vadd.f32 %v3065, %v2985
        %v3102 = vadd.f32 %v3066, %v2986
        %v3103 = vadd.f32 %v3067, %v2987
        %v3104 = vadd.f32 %v3068, %v2988
        %v3105 = vadd.f32 %v3069, %v2989
        %v3106 = vadd.f32 %v3070, %v2990
        %v3107 = vadd.f32 %v3071, %v2991
        %v3108 = vadd.f32 %v3072, %v2992
        %v3109 = vadd.f32 %v3073, %v2993
        %v3110 = vadd.f32 %v3074, %v2994
        %v3111 = vadd.f32 %v3075, %v2995
        %v3112 = vadd.f32 %v3076, %v2996
        %v3113 = vadd.f32 %v3077, %v2997
        %3114 = vst [vmem:[#allocation2] sm:$0xff] %v3078
        %3115 = vst [vmem:[#allocation2 + $0x8] sm:$0xff] %v3079
        %3116 = vst [vmem:[#allocation2 + $0x10] sm:$0xff] %v3080
        %3117 = vst [vmem:[#allocation2 + $0x18] sm:$0xff] %v3081
        %3118 = vst [vmem:[#allocation2 + $0x20] sm:$0xff] %v3082
        %3119 = vst [vmem:[#allocation2 + $0x28] sm:$0xff] %v3083
        %3120 = vst [vmem:[#allocation2 + $0x30] sm:$0xff] %v3084
        %3121 = vst [vmem:[#allocation2 + $0x38] sm:$0xff] %v3085
        %3122 = vst [vmem:[#allocation2 + $0x40] sm:$0xff] %v3086
        %3123 = vst [vmem:[#allocation2 + $0x48] sm:$0xff] %v3087
        %3124 = vst [vmem:[#allocation2 + $0x50] sm:$0xff] %v3088
        %3125 = vst [vmem:[#allocation2 + $0x58] sm:$0xff] %v3089
        %3126 = vst [vmem:[#allocation2 + $0x60] sm:$0xff] %v3090
        %3127 = vst [vmem:[#allocation2 + $0x68] sm:$0xff] %v3091
        %3128 = vst [vmem:[#allocation2 + $0x70] sm:$0xff] %v3092
        %3129 = vst [vmem:[#allocation2 + $0x78] sm:$0xff] %v3093
        %3130 = vst [vmem:[#allocation2 + $0x80] sm:$0xff] %v3094
        %3131 = vst [vmem:[#allocation2 + $0x88] sm:$0xff] %v3095
        %3132 = vst [vmem:[#allocation2 + $0x90] sm:$0xff] %v3096
        %3133 = vst [vmem:[#allocation2 + $0x98] sm:$0xff] %v3097
        %3134 = vst [vmem:[#allocation2 + $0xa0] sm:$0xff] %v3098
        %3135 = vst [vmem:[#allocation2 + $0xa8] sm:$0xff] %v3099
        %3136 = vst [vmem:[#allocation2 + $0xb0] sm:$0xff] %v3100
        %3137 = vst [vmem:[#allocation2 + $0xb8] sm:$0xff] %v3101
        %3138 = vst [vmem:[#allocation2 + $0xc0] sm:$0xff] %v3102
        %3139 = vst [vmem:[#allocation2 + $0xc8] sm:$0xff] %v3103
        %3140 = vst [vmem:[#allocation2 + $0xd0] sm:$0xff] %v3104
        %3141 = vst [vmem:[#allocation2 + $0xd8] sm:$0xff] %v3105
        %3142 = vst [vmem:[#allocation2 + $0xe0] sm:$0xff] %v3106
        %3143 = vst [vmem:[#allocation2 + $0xe8] sm:$0xff] %v3107
        %3144 = vst [vmem:[#allocation2 + $0xf0] sm:$0xff] %v3108
        %3145 = vst [vmem:[#allocation2 + $0xf8] sm:$0xff] %v3109
        %3146 = vst [vmem:[#allocation2 + $0x100] sm:$0xff] %v3110
        %3147 = vst [vmem:[#allocation2 + $0x108] sm:$0xff] %v3111
        %3148 = vst [vmem:[#allocation2 + $0x110] sm:$0xff] %v3112
        %3149 = vst [vmem:[#allocation2 + $0x118] sm:$0xff] %v3113
      $region40: #{conv_bn_relu.1} parent=31 // pred_fallthru
        _
      // Predicated region
      $region41: #{conv_bn_relu.1} parent=31 // pred_check
        %p3150 = pneg %p2998
      $region42: #{conv_bn_relu.1} parent=31 // pred_check_branch
        %3152 = sbr.rel (%p3150) target = $region44
      $region43: #{conv_bn_relu.1} parent=31 // pred_region
        %v3153 = vld [vmem:[#allocation2] sm:$0xff]
        %v3154 = vld [vmem:[#allocation2 + $0x8] sm:$0xff]
        %v3155 = vld [vmem:[#allocation2 + $0x10] sm:$0xff]
        %v3156 = vld [vmem:[#allocation2 + $0x18] sm:$0xff]
        %v3157 = vld [vmem:[#allocation2 + $0x20] sm:$0xff]
        %v3158 = vld [vmem:[#allocation2 + $0x28] sm:$0xff]
        %v3159 = vld [vmem:[#allocation2 + $0x30] sm:$0xff]
        %v3160 = vld [vmem:[#allocation2 + $0x38] sm:$0xff]
        %v3161 = vld [vmem:[#allocation2 + $0x40] sm:$0xff]
        %v3162 = vld [vmem:[#allocation2 + $0x48] sm:$0xff]
        %v3163 = vld [vmem:[#allocation2 + $0x50] sm:$0xff]
        %v3164 = vld [vmem:[#allocation2 + $0x58] sm:$0xff]
        %v3165 = vld [vmem:[#allocation2 + $0x60] sm:$0xff]
        %v3166 = vld [vmem:[#allocation2 + $0x68] sm:$0xff]
        %v3167 = vld [vmem:[#allocation2 + $0x70] sm:$0xff]
        %v3168 = vld [vmem:[#allocation2 + $0x78] sm:$0xff]
        %v3169 = vld [vmem:[#allocation2 + $0x80] sm:$0xff]
        %v3170 = vld [vmem:[#allocation2 + $0x88] sm:$0xff]
        %v3171 = vld [vmem:[#allocation2 + $0x90] sm:$0xff]
        %v3172 = vld [vmem:[#allocation2 + $0x98] sm:$0xff]
        %v3173 = vld [vmem:[#allocation2 + $0xa0] sm:$0xff]
        %v3174 = vld [vmem:[#allocation2 + $0xa8] sm:$0xff]
        %v3175 = vld [vmem:[#allocation2 + $0xb0] sm:$0xff]
        %v3176 = vld [vmem:[#allocation2 + $0xb8] sm:$0xff]
        %v3177 = vld [vmem:[#allocation2 + $0xc0] sm:$0xff]
        %v3178 = vld [vmem:[#allocation2 + $0xc8] sm:$0xff]
        %v3179 = vld [vmem:[#allocation2 + $0xd0] sm:$0xff]
        %v3180 = vld [vmem:[#allocation2 + $0xd8] sm:$0xff]
        %v3181 = vld [vmem:[#allocation2 + $0xe0] sm:$0xff]
        %v3182 = vld [vmem:[#allocation2 + $0xe8] sm:$0xff]
        %v3183 = vld [vmem:[#allocation2 + $0xf0] sm:$0xff]
        %v3184 = vld [vmem:[#allocation2 + $0xf8] sm:$0xff]
        %v3185 = vld [vmem:[#allocation2 + $0x100] sm:$0xff]
        %v3186 = vld [vmem:[#allocation2 + $0x108] sm:$0xff]
        %v3187 = vld [vmem:[#allocation2 + $0x110] sm:$0xff]
        %v3188 = vld [vmem:[#allocation2 + $0x118] sm:$0xff]
        %v3189 = vld [vmem:[%s242] sm:$0x1]
        %v3191 = vperm.slane %v3189, 0
        %v3193 = vadd.f32 %v3153, %v3191
        %v3194 = vadd.f32 %v3154, %v3191
        %v3195 = vadd.f32 %v3155, %v3191
        %v3196 = vadd.f32 %v3156, %v3191
        %v3197 = vadd.f32 %v3157, %v3191
        %v3198 = vadd.f32 %v3158, %v3191
        %v3199 = vadd.f32 %v3159, %v3191
        %v3200 = vadd.f32 %v3160, %v3191
        %v3201 = vadd.f32 %v3161, %v3191
        %v3202 = vadd.f32 %v3162, %v3191
        %v3203 = vadd.f32 %v3163, %v3191
        %v3204 = vadd.f32 %v3164, %v3191
        %v3205 = vadd.f32 %v3165, %v3191
        %v3206 = vadd.f32 %v3166, %v3191
        %v3207 = vadd.f32 %v3167, %v3191
        %v3208 = vadd.f32 %v3168, %v3191
        %v3209 = vadd.f32 %v3169, %v3191
        %v3210 = vadd.f32 %v3170, %v3191
        %v3211 = vadd.f32 %v3171, %v3191
        %v3212 = vadd.f32 %v3172, %v3191
        %v3213 = vadd.f32 %v3173, %v3191
        %v3214 = vadd.f32 %v3174, %v3191
        %v3215 = vadd.f32 %v3175, %v3191
        %v3216 = vadd.f32 %v3176, %v3191
        %v3217 = vadd.f32 %v3177, %v3191
        %v3218 = vadd.f32 %v3178, %v3191
        %v3219 = vadd.f32 %v3179, %v3191
        %v3220 = vadd.f32 %v3180, %v3191
        %v3221 = vadd.f32 %v3181, %v3191
        %v3222 = vadd.f32 %v3182, %v3191
        %v3223 = vadd.f32 %v3183, %v3191
        %v3224 = vadd.f32 %v3184, %v3191
        %v3225 = vadd.f32 %v3185, %v3191
        %v3226 = vadd.f32 %v3186, %v3191
        %v3227 = vadd.f32 %v3187, %v3191
        %v3228 = vadd.f32 %v3188, %v3191
        %v3229 = vmax.f32 %v3193, 0.0
        %v3230 = vmax.f32 %v3194, 0.0
        %v3231 = vmax.f32 %v3195, 0.0
        %v3232 = vmax.f32 %v3196, 0.0
        %v3233 = vmax.f32 %v3197, 0.0
        %v3234 = vmax.f32 %v3198, 0.0
        %v3235 = vmax.f32 %v3199, 0.0
        %v3236 = vmax.f32 %v3200, 0.0
        %v3237 = vmax.f32 %v3201, 0.0
        %v3238 = vmax.f32 %v3202, 0.0
        %v3239 = vmax.f32 %v3203, 0.0
        %v3240 = vmax.f32 %v3204, 0.0
        %v3241 = vmax.f32 %v3205, 0.0
        %v3242 = vmax.f32 %v3206, 0.0
        %v3243 = vmax.f32 %v3207, 0.0
        %v3244 = vmax.f32 %v3208, 0.0
        %v3245 = vmax.f32 %v3209, 0.0
        %v3246 = vmax.f32 %v3210, 0.0
        %v3247 = vmax.f32 %v3211, 0.0
        %v3248 = vmax.f32 %v3212, 0.0
        %v3249 = vmax.f32 %v3213, 0.0
        %v3250 = vmax.f32 %v3214, 0.0
        %v3251 = vmax.f32 %v3215, 0.0
        %v3252 = vmax.f32 %v3216, 0.0
        %v3253 = vmax.f32 %v3217, 0.0
        %v3254 = vmax.f32 %v3218, 0.0
        %v3255 = vmax.f32 %v3219, 0.0
        %v3256 = vmax.f32 %v3220, 0.0
        %v3257 = vmax.f32 %v3221, 0.0
        %v3258 = vmax.f32 %v3222, 0.0
        %v3259 = vmax.f32 %v3223, 0.0
        %v3260 = vmax.f32 %v3224, 0.0
        %v3261 = vmax.f32 %v3225, 0.0
        %v3262 = vmax.f32 %v3226, 0.0
        %v3263 = vmax.f32 %v3227, 0.0
        %v3264 = vmax.f32 %v3228, 0.0
        %3265 = vst [vmem:[%s250] sm:$0xff] %v3229
        %3266 = vst [vmem:[%s250 + $0x8] sm:$0xff] %v3230
        %3267 = vst [vmem:[%s250 + $0x10] sm:$0xff] %v3231
        %3268 = vst [vmem:[%s250 + $0x18] sm:$0xff] %v3232
        %3269 = vst [vmem:[%s250 + $0x20] sm:$0xff] %v3233
        %3270 = vst [vmem:[%s250 + $0x28] sm:$0xff] %v3234
        %3271 = vst [vmem:[%s250 + $0x30] sm:$0xff] %v3235
        %3272 = vst [vmem:[%s250 + $0x38] sm:$0xff] %v3236
        %3273 = vst [vmem:[%s250 + $0x40] sm:$0xff] %v3237
        %3274 = vst [vmem:[%s250 + $0x48] sm:$0xff] %v3238
        %3275 = vst [vmem:[%s250 + $0x50] sm:$0xff] %v3239
        %3276 = vst [vmem:[%s250 + $0x58] sm:$0xff] %v3240
        %3277 = vst [vmem:[%s250 + $0x60] sm:$0xff] %v3241
        %3278 = vst [vmem:[%s250 + $0x68] sm:$0xff] %v3242
        %3279 = vst [vmem:[%s250 + $0x70] sm:$0xff] %v3243
        %3280 = vst [vmem:[%s250 + $0x78] sm:$0xff] %v3244
        %3281 = vst [vmem:[%s250 + $0x80] sm:$0xff] %v3245
        %3282 = vst [vmem:[%s250 + $0x88] sm:$0xff] %v3246
        %3283 = vst [vmem:[%s250 + $0x90] sm:$0xff] %v3247
        %3284 = vst [vmem:[%s250 + $0x98] sm:$0xff] %v3248
        %3285 = vst [vmem:[%s250 + $0xa0] sm:$0xff] %v3249
        %3286 = vst [vmem:[%s250 + $0xa8] sm:$0xff] %v3250
        %3287 = vst [vmem:[%s250 + $0xb0] sm:$0xff] %v3251
        %3288 = vst [vmem:[%s250 + $0xb8] sm:$0xff] %v3252
        %3289 = vst [vmem:[%s250 + $0xc0] sm:$0xff] %v3253
        %3290 = vst [vmem:[%s250 + $0xc8] sm:$0xff] %v3254
        %3291 = vst [vmem:[%s250 + $0xd0] sm:$0xff] %v3255
        %3292 = vst [vmem:[%s250 + $0xd8] sm:$0xff] %v3256
        %3293 = vst [vmem:[%s250 + $0xe0] sm:$0xff] %v3257
        %3294 = vst [vmem:[%s250 + $0xe8] sm:$0xff] %v3258
        %3295 = vst [vmem:[%s250 + $0xf0] sm:$0xff] %v3259
        %3296 = vst [vmem:[%s250 + $0xf8] sm:$0xff] %v3260
        %3297 = vst [vmem:[%s250 + $0x100] sm:$0xff] %v3261
        %3298 = vst [vmem:[%s250 + $0x108] sm:$0xff] %v3262
        %3299 = vst [vmem:[%s250 + $0x110] sm:$0xff] %v3263
        %3300 = vst [vmem:[%s250 + $0x118] sm:$0xff] %v3264
      $region44: #{conv_bn_relu.1} parent=31 // pred_fallthru
        _
      %p3301 = scmp.lt.s32.totalorder %s20, 1
      %s3302 = scalar_select %p3301, %s20, 1
      %p3303 = scmp.lt.s32.totalorder %s19, 0
      %s3304 = scalar_select %p3303, %s19, 0
      %s3305 = smul.addr %s3302, 36
      %s3306 = sadd.s32 %s3304, %s3305
      %s3307 = smul.addr %s3306, 8
      %s3308 = scalar_lea.vmem %s3, %s3307
      // Predicated region
      $region45: #{conv_bn_relu.1} parent=31 // pred_check
        %p3309 = pneg %p135
      $region46: #{conv_bn_relu.1} parent=31 // pred_check_branch
        %3311 = sbr.rel (%p3309) target = $region48
      $region47: #{conv_bn_relu.1} parent=31 // pred_region
        _
      $region48: #{conv_bn_relu.1} parent=31 // pred_fallthru
        _
    $region32: #{conv_bn_relu.1} parent=5 // pred_fallthru
      _
    %p3312 = scmp.le.s32.totalorder 2, %s9
    // Predicated region
    $region49: #{conv_bn_relu.1} parent=5 // pred_check
      %p3313 = pneg %p3312
    $region50: #{conv_bn_relu.1} parent=5 // pred_check_branch
      %3315 = sbr.rel (%p3313) target = $region52
    $region51: #{conv_bn_relu.1} parent=5 // pred_region
      %s3316 = ssub.s32 %s9, 2
      // Predicated region
      $region53: #{conv_bn_relu.1} parent=51 // pred_check
        %p3317 = pneg %p141
      $region54: #{conv_bn_relu.1} parent=51 // pred_check_branch
        %3319 = sbr.rel (%p3317) target = $region56
      $region55: #{conv_bn_relu.1} parent=51 // pred_region
        %p3320 = scmp.lt.s32.totalorder %s23, 1
        %s3321 = scalar_select %p3320, %s23, 1
        %p3322 = scmp.lt.s32.totalorder %s22, 0
        %s3323 = scalar_select %p3322, %s22, 0
        %s3324 = smul.addr %s3321, 36
        %s3325 = sadd.s32 %s3323, %s3324
        %s3326 = smul.addr %s3325, 8
        %s3327 = scalar_lea.vmem %s3, %s3326
      $region56: #{conv_bn_relu.1} parent=51 // pred_fallthru
        _
    $region52: #{conv_bn_relu.1} parent=5 // pred_fallthru
      _
  $region6: #{conv_bn_relu.1} parent=0 // loop_footer
    %s13 = sadd.s32 1, %s9
  $region7: #{conv_bn_relu.1} parent=0 // loop_footer_branch
    %8 = sbr.rel target = $region3
  $region8: #{conv_bn_relu.1} parent=0 // loop_exit
    _

</llo_original>
